<compile_context>
chip_gen: v7x
topology: tpu7x:2x2x1
jax: 0.10.0
libtpu: 0.0.40
codegen_flags: <defaults>
</compile_context>

<pallas_src>
import functools

import jax
import jax.numpy as jnp
from jax.experimental import pallas as pl
from jax.experimental.pallas import tpu as pltpu

EPS = 1e-3  # BatchNorm2d(eps=0.001)


def _se_conv_bn_kernel(x_ref, gate_ref, w1_ref, g1_ref, b1_ref,
                       w2_ref, g2_ref, b2_ref, o_ref, *, r_true):
    # x_ref:    (R_pad, C0) f32, rows >= r_true are zero-padded
    # gate_ref: (1, C0)     f32
    # w1_ref:   (C0, C1)    bf16  (pre-transposed 1x1 conv weight)
    # g1/b1:    (1, C1)     f32
    # w2_ref:   (C1, TN2)   bf16  (current C2 tile of pre-transposed weight)
    # g2/b2:    (1, TN2)    f32
    # o_ref:    (R_pad, TN2) f32
    inv_r = 1.0 / float(r_true)

    x = x_ref[...]
    # sigmoid on the (1, C0) gate row only (960 EUP elems), broadcast multiply.
    gated = jax.nn.sigmoid(gate_ref[...]) * x          # pad rows stay exactly 0

    # conv2d98: 1x1, 960 -> 256, no bias  == matmul (bf16 in, f32 accumulate)
    y1 = jnp.dot(gated.astype(jnp.bfloat16), w1_ref[...],
                 preferred_element_type=jnp.float32)   # (R_pad, C1), pad rows 0

    # batchnorm2d66 (training mode, biased variance over the true rows).
    # Pad rows of y1 are exactly zero, so plain sums over R_pad are exact.
    s1 = jnp.sum(y1, axis=0, keepdims=True)
    ss1 = jnp.sum(y1 * y1, axis=0, keepdims=True)
    mean1 = s1 * inv_r
    var1 = jnp.maximum(ss1 * inv_r - mean1 * mean1, 0.0)
    y1n = (y1 - mean1) * jax.lax.rsqrt(var1 + EPS) * g1_ref[...] + b1_ref[...]

    # Re-zero the pad rows so BN2 statistics stay exact.
    row_ids = jax.lax.broadcasted_iota(jnp.int32, y1n.shape, 0)
    y1n = jnp.where(row_ids < r_true, y1n, 0.0)

    # conv2d99 tile: 1x1, 256 -> TN2 slice of 1536, no bias.
    y2 = jnp.dot(y1n.astype(jnp.bfloat16), w2_ref[...],
                 preferred_element_type=jnp.float32)   # (R_pad, TN2), pad rows 0

    # batchnorm2d67 per C2 tile (stats reduce over rows, so per-tile is exact).
    s2 = jnp.sum(y2, axis=0, keepdims=True)
    ss2 = jnp.sum(y2 * y2, axis=0, keepdims=True)
    mean2 = s2 * inv_r
    var2 = jnp.maximum(ss2 * inv_r - mean2 * mean2, 0.0)
    o_ref[...] = ((y2 - mean2) * jax.lax.rsqrt(var2 + EPS)
                  * g2_ref[...] + b2_ref[...]).astype(o_ref.dtype)


def se_conv_bn_forward(x311, x307, w1, gamma1, beta1, w2, gamma2, beta2,
                       *, tile_n2=512):
    """x311: (N, 960, 1, 1) gate, x307: (N, 960, H, W) features (NCHW).
    w1: (256, 960, 1, 1), w2: (1536, 256, 1, 1). Returns (N, 1536, H, W)."""
    N, C0, H, W = x307.shape
    C1 = w1.shape[0]
    C2 = w2.shape[0]
    # TODO(synk): kernel is specialized to N == 1 (as in the module spec); for
    # N > 1 the gate row would have to be selected per sample.
    assert N == 1, "kernel specialized for N == 1"
    assert C2 % tile_n2 == 0

    R = N * H * W
    R_pad = ((R + 7) // 8) * 8     # 49 -> 56 (sublane multiple)

    # NCHW -> (rows, C) slab, zero-padded rows.
    x_rows = jnp.transpose(x307.reshape(N, C0, H * W), (0, 2, 1)).reshape(R, C0)
    x_rows = jnp.pad(x_rows, ((0, R_pad - R), (0, 0)))

    gate = x311.reshape(N, C0)[:1].astype(jnp.float32)

    # Pre-transposed, bf16 weights (MXU-native; halves weight HBM traffic).
    w1t = w1.reshape(C1, C0).T.astype(jnp.bfloat16)     # (C0, C1)
    w2t = w2.reshape(C2, C1).T.astype(jnp.bfloat16)     # (C1, C2)
    g1 = gamma1.reshape(1, C1).astype(jnp.float32)
    b1 = beta1.reshape(1, C1).astype(jnp.float32)
    g2 = gamma2.reshape(1, C2).astype(jnp.float32)
    b2 = beta2.reshape(1, C2).astype(jnp.float32)

    grid = (C2 // tile_n2,)
    kernel = functools.partial(_se_conv_bn_kernel, r_true=R)

    out_rows = pl.pallas_call(
        kernel,
        out_shape=jax.ShapeDtypeStruct((R_pad, C2), jnp.float32),
        grid=grid,
        in_specs=[
            pl.BlockSpec((R_pad, C0), lambda j: (0, 0)),      # x rows (resident)
            pl.BlockSpec((1, C0), lambda j: (0, 0)),          # gate
            pl.BlockSpec((C0, C1), lambda j: (0, 0)),         # w1^T (resident)
            pl.BlockSpec((1, C1), lambda j: (0, 0)),          # gamma1
            pl.BlockSpec((1, C1), lambda j: (0, 0)),          # beta1
            pl.BlockSpec((C1, tile_n2), lambda j: (0, j)),    # w2^T tile (pipelined)
            pl.BlockSpec((1, tile_n2), lambda j: (0, j)),     # gamma2 tile
            pl.BlockSpec((1, tile_n2), lambda j: (0, j)),     # beta2 tile
        ],
        out_specs=pl.BlockSpec((R_pad, tile_n2), lambda j: (0, j)),
        compiler_params=pltpu.CompilerParams(
            dimension_semantics=("parallel",)),
    )(x_rows, gate, w1t, g1, b1, w2t, g2, b2)

    # (rows, C2) -> NCHW, dropping the pad rows.
    out_rows = out_rows[:R]
    return jnp.transpose(out_rows.reshape(N, H * W, C2), (0, 2, 1)).reshape(
        N, C2, H, W)


if __name__ == "__main__":
    key = jax.random.PRNGKey(0)
    k1, k2, k3, k4, k5, k6, k7, k8 = jax.random.split(key, 8)

    N, C0, H, W = 1, 960, 7, 7
    C1, C2 = 256, 1536

    # Inputs (match the module's forward signature shapes)
    x307 = jax.random.normal(k1, (N, C0, H, W), dtype=jnp.float32)
    x311 = jax.random.normal(k2, (N, C0, 1, 1), dtype=jnp.float32)

    # Deterministic parameter init (shapes from __init__)
    w1 = jax.random.normal(k3, (C1, C0, 1, 1), dtype=jnp.float32) * 0.05
    w2 = jax.random.normal(k4, (C2, C1, 1, 1), dtype=jnp.float32) * 0.05
    gamma1 = 1.0 + 0.1 * jax.random.normal(k5, (C1,), dtype=jnp.float32)
    beta1 = 0.1 * jax.random.normal(k6, (C1,), dtype=jnp.float32)
    gamma2 = 1.0 + 0.1 * jax.random.normal(k7, (C2,), dtype=jnp.float32)
    beta2 = 0.1 * jax.random.normal(k8, (C2,), dtype=jnp.float32)

    out = se_conv_bn_forward(x311, x307, w1, gamma1, beta1, w2, gamma2, beta2)
    jax.block_until_ready(out)
    assert out.shape == (N, C2, H, W), out.shape
    assert bool(jnp.all(jnp.isfinite(out)))
    print("KERNEL_OK")
</pallas_src>

<mosaic_0001>
module attributes {stable_mosaic.version = 11 : i64} {
  func.func @_se_conv_bn_kernel(%arg0: i32, %arg1: memref<56x960xf32, #tpu.memory_space<vmem>>, %arg2: memref<1x960xf32, #tpu.memory_space<vmem>>, %arg3: memref<960x256xbf16, #tpu.memory_space<vmem>>, %arg4: memref<1x256xf32, #tpu.memory_space<vmem>>, %arg5: memref<1x256xf32, #tpu.memory_space<vmem>>, %arg6: memref<256x512xbf16, #tpu.memory_space<vmem>>, %arg7: memref<1x512xf32, #tpu.memory_space<vmem>>, %arg8: memref<1x512xf32, #tpu.memory_space<vmem>>, %arg9: memref<56x512xf32, #tpu.memory_space<vmem>>) attributes {dimension_semantics = [#tpu.dimension_semantics<parallel>], iteration_bounds = array<i64: 3>, scalar_prefetch = 0 : i64, scratch_operands = 0 : i64, tpu.core_type = #tpu.core_type<tc>, window_params = [{pipeline_mode = #tpu.pipeline_mode<synchronous>, transform_indices = @transform_0, window_bounds = array<i64: 56, 960>}, {pipeline_mode = #tpu.pipeline_mode<synchronous>, transform_indices = @transform_1, window_bounds = array<i64: 1, 960>}, {pipeline_mode = #tpu.pipeline_mode<synchronous>, transform_indices = @transform_2, window_bounds = array<i64: 960, 256>}, {pipeline_mode = #tpu.pipeline_mode<synchronous>, transform_indices = @transform_3, window_bounds = array<i64: 1, 256>}, {pipeline_mode = #tpu.pipeline_mode<synchronous>, transform_indices = @transform_4, window_bounds = array<i64: 1, 256>}, {transform_indices = @transform_5, window_bounds = array<i64: 256, 512>}, {transform_indices = @transform_6, window_bounds = array<i64: 1, 512>}, {transform_indices = @transform_7, window_bounds = array<i64: 1, 512>}, {transform_indices = @transform_8, window_bounds = array<i64: 56, 512>}]} {
    %c0 = arith.constant 0 : index
    %c0_0 = arith.constant 0 : index
    %0 = vector.load %arg1[%c0, %c0_0] : memref<56x960xf32, #tpu.memory_space<vmem>>, vector<56x960xf32>
    %c0_1 = arith.constant 0 : index
    %c0_2 = arith.constant 0 : index
    %1 = vector.load %arg2[%c0_1, %c0_2] : memref<1x960xf32, #tpu.memory_space<vmem>>, vector<1x960xf32>
    %2 = arith.negf %1 : vector<1x960xf32>
    %3 = math.exp %2 : vector<1x960xf32>
    %cst = arith.constant 1.000000e+00 : f32
    %4 = vector.broadcast %cst : f32 to vector<1x960xf32>
    %5 = arith.addf %4, %3 : vector<1x960xf32>
    %6 = arith.divf %4, %5 : vector<1x960xf32>
    %7 = vector.broadcast %6 : vector<1x960xf32> to vector<56x960xf32>
    %8 = arith.mulf %7, %0 : vector<56x960xf32>
    %9 = arith.truncf %8 : vector<56x960xf32> to vector<56x960xbf16>
    %c0_3 = arith.constant 0 : index
    %c0_4 = arith.constant 0 : index
    %10 = vector.load %arg3[%c0_3, %c0_4] : memref<960x256xbf16, #tpu.memory_space<vmem>>, vector<960x256xbf16>
    %cst_5 = arith.constant dense<0.000000e+00> : vector<56x256xf32>
    %11 = tpu.matmul %9, %10, %cst_5 {dimension_numbers = #tpu.dot_dimension_numbers<[1], [0], [0], [1], [0, 0, 1, 1], [], []>} : vector<56x960xbf16>, vector<960x256xbf16>, vector<56x256xf32> -> vector<56x256xf32>
    %cst_6 = arith.constant dense<0.000000e+00> : vector<256xf32>
    %12 = vector.multi_reduction <add>, %11, %cst_6 [0] : vector<56x256xf32> to vector<256xf32>
    %13 = vector.shape_cast %12 : vector<256xf32> to vector<1x256xf32>
    %14 = arith.mulf %11, %11 : vector<56x256xf32>
    %cst_7 = arith.constant dense<0.000000e+00> : vector<256xf32>
    %15 = vector.multi_reduction <add>, %14, %cst_7 [0] : vector<56x256xf32> to vector<256xf32>
    %16 = vector.shape_cast %15 : vector<256xf32> to vector<1x256xf32>
    %cst_8 = arith.constant 0.0204081628 : f32
    %17 = vector.broadcast %cst_8 : f32 to vector<1x256xf32>
    %18 = arith.mulf %13, %17 : vector<1x256xf32>
    %cst_9 = arith.constant 0.0204081628 : f32
    %19 = vector.broadcast %cst_9 : f32 to vector<1x256xf32>
    %20 = arith.mulf %16, %19 : vector<1x256xf32>
    %21 = arith.mulf %18, %18 : vector<1x256xf32>
    %22 = arith.subf %20, %21 : vector<1x256xf32>
    %cst_10 = arith.constant 0.000000e+00 : f32
    %23 = vector.broadcast %cst_10 : f32 to vector<1x256xf32>
    %24 = arith.maximumf %22, %23 : vector<1x256xf32>
    %25 = vector.broadcast %18 : vector<1x256xf32> to vector<56x256xf32>
    %26 = arith.subf %11, %25 : vector<56x256xf32>
    %cst_11 = arith.constant 1.000000e-03 : f32
    %27 = vector.broadcast %cst_11 : f32 to vector<1x256xf32>
    %28 = arith.addf %24, %27 : vector<1x256xf32>
    %29 = math.rsqrt %28 : vector<1x256xf32>
    %30 = vector.broadcast %29 : vector<1x256xf32> to vector<56x256xf32>
    %31 = arith.mulf %26, %30 : vector<56x256xf32>
    %c0_12 = arith.constant 0 : index
    %c0_13 = arith.constant 0 : index
    %32 = vector.load %arg4[%c0_12, %c0_13] : memref<1x256xf32, #tpu.memory_space<vmem>>, vector<1x256xf32>
    %33 = vector.broadcast %32 : vector<1x256xf32> to vector<56x256xf32>
    %34 = arith.mulf %31, %33 : vector<56x256xf32>
    %c0_14 = arith.constant 0 : index
    %c0_15 = arith.constant 0 : index
    %35 = vector.load %arg5[%c0_14, %c0_15] : memref<1x256xf32, #tpu.memory_space<vmem>>, vector<1x256xf32>
    %36 = vector.broadcast %35 : vector<1x256xf32> to vector<56x256xf32>
    %37 = arith.addf %34, %36 : vector<56x256xf32>
    %38 = tpu.iota {dimensions = array<i32: 0>} : vector<56x256xi32>
    %c49_i32 = arith.constant 49 : i32
    %39 = vector.broadcast %c49_i32 : i32 to vector<56x256xi32>
    %40 = arith.cmpi slt, %38, %39 : vector<56x256xi32>
    %cst_16 = arith.constant 0.000000e+00 : f32
    %41 = vector.broadcast %cst_16 : f32 to vector<56x256xf32>
    %42 = arith.select %40, %37, %41 : vector<56x256xi1>, vector<56x256xf32>
    %43 = arith.truncf %42 : vector<56x256xf32> to vector<56x256xbf16>
    %c0_17 = arith.constant 0 : index
    %c0_18 = arith.constant 0 : index
    %44 = vector.load %arg6[%c0_17, %c0_18] : memref<256x512xbf16, #tpu.memory_space<vmem>>, vector<256x512xbf16>
    %cst_19 = arith.constant dense<0.000000e+00> : vector<56x512xf32>
    %45 = tpu.matmul %43, %44, %cst_19 {dimension_numbers = #tpu.dot_dimension_numbers<[1], [0], [0], [1], [0, 0, 1, 1], [], []>} : vector<56x256xbf16>, vector<256x512xbf16>, vector<56x512xf32> -> vector<56x512xf32>
    %cst_20 = arith.constant dense<0.000000e+00> : vector<512xf32>
    %46 = vector.multi_reduction <add>, %45, %cst_20 [0] : vector<56x512xf32> to vector<512xf32>
    %47 = vector.shape_cast %46 : vector<512xf32> to vector<1x512xf32>
    %48 = arith.mulf %45, %45 : vector<56x512xf32>
    %cst_21 = arith.constant dense<0.000000e+00> : vector<512xf32>
    %49 = vector.multi_reduction <add>, %48, %cst_21 [0] : vector<56x512xf32> to vector<512xf32>
    %50 = vector.shape_cast %49 : vector<512xf32> to vector<1x512xf32>
    %cst_22 = arith.constant 0.0204081628 : f32
    %51 = vector.broadcast %cst_22 : f32 to vector<1x512xf32>
    %52 = arith.mulf %47, %51 : vector<1x512xf32>
    %cst_23 = arith.constant 0.0204081628 : f32
    %53 = vector.broadcast %cst_23 : f32 to vector<1x512xf32>
    %54 = arith.mulf %50, %53 : vector<1x512xf32>
    %55 = arith.mulf %52, %52 : vector<1x512xf32>
    %56 = arith.subf %54, %55 : vector<1x512xf32>
    %cst_24 = arith.constant 0.000000e+00 : f32
    %57 = vector.broadcast %cst_24 : f32 to vector<1x512xf32>
    %58 = arith.maximumf %56, %57 : vector<1x512xf32>
    %59 = vector.broadcast %52 : vector<1x512xf32> to vector<56x512xf32>
    %60 = arith.subf %45, %59 : vector<56x512xf32>
    %cst_25 = arith.constant 1.000000e-03 : f32
    %61 = vector.broadcast %cst_25 : f32 to vector<1x512xf32>
    %62 = arith.addf %58, %61 : vector<1x512xf32>
    %63 = math.rsqrt %62 : vector<1x512xf32>
    %64 = vector.broadcast %63 : vector<1x512xf32> to vector<56x512xf32>
    %65 = arith.mulf %60, %64 : vector<56x512xf32>
    %c0_26 = arith.constant 0 : index
    %c0_27 = arith.constant 0 : index
    %66 = vector.load %arg7[%c0_26, %c0_27] : memref<1x512xf32, #tpu.memory_space<vmem>>, vector<1x512xf32>
    %67 = vector.broadcast %66 : vector<1x512xf32> to vector<56x512xf32>
    %68 = arith.mulf %65, %67 : vector<56x512xf32>
    %c0_28 = arith.constant 0 : index
    %c0_29 = arith.constant 0 : index
    %69 = vector.load %arg8[%c0_28, %c0_29] : memref<1x512xf32, #tpu.memory_space<vmem>>, vector<1x512xf32>
    %70 = vector.broadcast %69 : vector<1x512xf32> to vector<56x512xf32>
    %71 = arith.addf %68, %70 : vector<56x512xf32>
    %c0_30 = arith.constant 0 : index
    %c0_31 = arith.constant 0 : index
    %72 = vector.load %arg9[%c0_30, %c0_31] : memref<56x512xf32, #tpu.memory_space<vmem>>, vector<56x512xf32>
    tpu.vector_store %arg9[%c0_30, %c0_31], %71 {strides = array<i32>} : memref<56x512xf32, #tpu.memory_space<vmem>>, vector<56x512xf32>,
    return
  }
  func.func @transform_0(%arg0: i32) -> (i32, i32) {
    %c0_i32 = arith.constant 0 : i32
    %c0_i32_0 = arith.constant 0 : i32
    %c0_i32_1 = arith.constant 0 : i32
    return %c0_i32, %c0_i32_0 : i32, i32
  }
  func.func @transform_1(%arg0: i32) -> (i32, i32) {
    %c0_i32 = arith.constant 0 : i32
    %c0_i32_0 = arith.constant 0 : i32
    %c0_i32_1 = arith.constant 0 : i32
    return %c0_i32, %c0_i32_0 : i32, i32
  }
  func.func @transform_2(%arg0: i32) -> (i32, i32) {
    %c0_i32 = arith.constant 0 : i32
    %c0_i32_0 = arith.constant 0 : i32
    %c0_i32_1 = arith.constant 0 : i32
    return %c0_i32, %c0_i32_0 : i32, i32
  }
  func.func @transform_3(%arg0: i32) -> (i32, i32) {
    %c0_i32 = arith.constant 0 : i32
    %c0_i32_0 = arith.constant 0 : i32
    %c0_i32_1 = arith.constant 0 : i32
    return %c0_i32, %c0_i32_0 : i32, i32
  }
  func.func @transform_4(%arg0: i32) -> (i32, i32) {
    %c0_i32 = arith.constant 0 : i32
    %c0_i32_0 = arith.constant 0 : i32
    %c0_i32_1 = arith.constant 0 : i32
    return %c0_i32, %c0_i32_0 : i32, i32
  }
  func.func @transform_5(%arg0: i32) -> (i32, i32) {
    %c0_i32 = arith.constant 0 : i32
    %c0_i32_0 = arith.constant 0 : i32
    return %c0_i32, %arg0 : i32, i32
  }
  func.func @transform_6(%arg0: i32) -> (i32, i32) {
    %c0_i32 = arith.constant 0 : i32
    %c0_i32_0 = arith.constant 0 : i32
    return %c0_i32, %arg0 : i32, i32
  }
  func.func @transform_7(%arg0: i32) -> (i32, i32) {
    %c0_i32 = arith.constant 0 : i32
    %c0_i32_0 = arith.constant 0 : i32
    return %c0_i32, %arg0 : i32, i32
  }
  func.func @transform_8(%arg0: i32) -> (i32, i32) {
    %c0_i32 = arith.constant 0 : i32
    %c0_i32_0 = arith.constant 0 : i32
    return %c0_i32, %arg0 : i32, i32
  }
}

</mosaic_0001>

<llo_original>
// kernel: tpu_custom_call.1
$region0: #{tpu_custom_call.1}
  #allocation0 [shape = 'u32[]', space=smem, size = 0x4, offset = 0x4, fixed_abs, tag = 'smem constant byte address 0x4 - core index']
  #allocation1 [shape = 'u32[144,128]{1,0:T(1,128)}', space=vmem, size = 0x12000, scoped, tag = 'internal scratch']
  %s0 = inlined_call_operand.hbm [shape: f32[56,960], index: 0, kind: input, shape index: {}]
  %s1 = inlined_call_operand.hbm [shape: f32[1,960], index: 1, kind: input, shape index: {}]
  %s2 = inlined_call_operand.hbm [shape: bf16[960,256], index: 2, kind: input, shape index: {}]
  %s3 = inlined_call_operand.vmem [shape: f32[1,256], index: 3, kind: input, shape index: {}]
  %s4 = inlined_call_operand.hbm [shape: f32[1,256], index: 4, kind: input, shape index: {}]
  %s5 = inlined_call_operand.hbm [shape: bf16[256,1536], index: 5, kind: input, shape index: {}]
  %s6 = inlined_call_operand.vmem [shape: f32[1,1536], index: 6, kind: input, shape index: {}]
  %s7 = inlined_call_operand.vmem [shape: f32[1,1536], index: 7, kind: input, shape index: {}]
  %s8 = inlined_call_operand.hbm [shape: f32[56,1536], index: 8, kind: output, shape index: {}]
  %s9 = sld [smem:[#allocation0]]
  $region85: #{tpu_custom_call.1} parent=0
    _
  %s11 = ssub.s32 1, %s9
  %s12 = scalar_select 0, %s11, %s9
  $region1: #{tpu_custom_call.1} parent=0
    #allocation2 [shape = 'u8[229376]{0}', space=vmem, size = 0x38000, scoped, tag = 'input window, operand 0, single buffered']
    #allocation3 [shape = 's32[2]{0}', space=sflag, size = 0x8, scoped, tag = 'scoped memory for tpu_custom_call.1']
    #allocation4 [shape = 's32[2]{0}', space=sflag, size = 0x8, scoped, tag = 'scoped memory for tpu_custom_call.1']
    #allocation5 [shape = 'u8[4096]{0}', space=vmem, size = 0x1000, scoped, tag = 'input window, operand 1, single buffered']
    #allocation6 [shape = 's32[1]{0}', space=sflag, size = 0x4, scoped, tag = 'scoped memory for tpu_custom_call.1']
    #allocation7 [shape = 'u8[491520]{0}', space=vmem, size = 0x78000, scoped, tag = 'input window, operand 2, single buffered']
    #allocation8 [shape = 'u8[1024]{0}', space=vmem, size = 0x400, scoped, tag = 'input window, operand 4, single buffered']
    #allocation9 [shape = 's32[1]{0}', space=sflag, size = 0x4, scoped, tag = 'scoped memory for tpu_custom_call.1']
    #allocation10 [shape = 'u8[524288]{0}', space=vmem, size = 0x80000, scoped, tag = 'input window, operand 5']
    #allocation11 [shape = 'u8[229376]{0}', space=vmem, size = 0x38000, scoped, tag = 'output window, operand 0']
    %13 = vsyncpa [#allocation3], 0
    %14 = vsyncpa [#allocation6], 0
    %15 = vsyncpa [#allocation9], 0
    %16 = vsyncpa [#allocation4], 0
    %s17 = scalar_lea.sflag [#allocation4], 1
    %18 = vsyncpa %s17, 0
    loop: start=0, step=1, limit=5
    $region2: #{tpu_custom_call.1} parent=1 // loop_pre_header
      _
    $region3: #{tpu_custom_call.1} parent=1 // loop_header
      %s20 = sphi 0, %s24
      %p21 = scmp.ge.s32.totalorder %s20, 5
      %s28 = sphi 0, %s28
      %s30 = sphi 0, %s28
      %s31 = sphi 0, %s30
      %s45 = sphi 0, %s31
      %s49 = sphi 0, %s49
      %s51 = sphi 0, %s49
      %s52 = sphi 0, %s51
      %s66 = sphi 0, %s52
      %s70 = sphi 0, %s70
      %s72 = sphi 0, %s70
      %s73 = sphi 0, %s72
      %s87 = sphi 0, %s73
      %s91 = sphi 0, %s91
      %s93 = sphi 0, %s91
      %s94 = sphi 0, %s93
      %s108 = sphi 0, %s94
      %s112 = sphi 0, %s112
      %s114 = sphi 0, %s112
      %s115 = sphi 0, %s114
      %s129 = sphi 0, %s115
      %s135 = sphi 0, %s137
      %s138 = sphi 0, %s135
      %s139 = sphi 0, %s138
      %s155 = sphi 0, %s139
      %s161 = sphi 0, %s163
      %s164 = sphi 0, %s161
      %s165 = sphi 0, %s164
      %s181 = sphi 0, %s165
      %s187 = sphi 0, %s189
      %s190 = sphi 0, %s187
      %s191 = sphi 0, %s190
      %s207 = sphi 0, %s191
      %s213 = sphi 0, %s215
      %s216 = sphi 0, %s213
      %s217 = sphi 0, %s216
      %s233 = sphi 0, %s217
    $region4: #{tpu_custom_call.1} parent=1 // loop_header_branch
      %23 = sbr.rel (%p21) target = $region8
    $region5: #{tpu_custom_call.1} parent=1 // loop_body
      %s25 = ssub.s32 %s20, 1
      %s26 = ssub.s32 %s20, 2
      %s27 = sadd.s32 %s20, 1
      %s29 = sadd.s32 %s28, 1
      %p32 = scmp.eq.s32.totalorder %s20, 2
      %p33 = scmp.ne.s32.totalorder %s28, %s30
      %p34 = scmp.eq.s32.totalorder %s20, 0
      %p35 = por %p33, %p34
      %p36 = scmp.ne.s32.totalorder %s28, %s30
      %p37 = scmp.eq.s32.totalorder %s25, 2
      %p38 = por %p36, %p37
      %p39 = scmp.ne.s32.totalorder %s30, %s31
      %p40 = scmp.eq.s32.totalorder %s25, 0
      %p41 = por %p39, %p40
      %p42 = scmp.ne.s32.totalorder %s30, %s31
      %p43 = scmp.eq.s32.totalorder %s26, 2
      %p44 = por %p42, %p43
      %p46 = scmp.ne.s32.totalorder %s31, %s45
      %p47 = scmp.eq.s32.totalorder %s26, 0
      %p48 = por %p46, %p47
      %s50 = sadd.s32 %s49, 1
      %p53 = scmp.eq.s32.totalorder %s20, 2
      %p54 = scmp.ne.s32.totalorder %s49, %s51
      %p55 = scmp.eq.s32.totalorder %s20, 0
      %p56 = por %p54, %p55
      %p57 = scmp.ne.s32.totalorder %s49, %s51
      %p58 = scmp.eq.s32.totalorder %s25, 2
      %p59 = por %p57, %p58
      %p60 = scmp.ne.s32.totalorder %s51, %s52
      %p61 = scmp.eq.s32.totalorder %s25, 0
      %p62 = por %p60, %p61
      %p63 = scmp.ne.s32.totalorder %s51, %s52
      %p64 = scmp.eq.s32.totalorder %s26, 2
      %p65 = por %p63, %p64
      %p67 = scmp.ne.s32.totalorder %s52, %s66
      %p68 = scmp.eq.s32.totalorder %s26, 0
      %p69 = por %p67, %p68
      %s71 = sadd.s32 %s70, 1
      %p74 = scmp.eq.s32.totalorder %s20, 2
      %p75 = scmp.ne.s32.totalorder %s70, %s72
      %p76 = scmp.eq.s32.totalorder %s20, 0
      %p77 = por %p75, %p76
      %p78 = scmp.ne.s32.totalorder %s70, %s72
      %p79 = scmp.eq.s32.totalorder %s25, 2
      %p80 = por %p78, %p79
      %p81 = scmp.ne.s32.totalorder %s72, %s73
      %p82 = scmp.eq.s32.totalorder %s25, 0
      %p83 = por %p81, %p82
      %p84 = scmp.ne.s32.totalorder %s72, %s73
      %p85 = scmp.eq.s32.totalorder %s26, 2
      %p86 = por %p84, %p85
      %p88 = scmp.ne.s32.totalorder %s73, %s87
      %p89 = scmp.eq.s32.totalorder %s26, 0
      %p90 = por %p88, %p89
      %s92 = sadd.s32 %s91, 1
      %p95 = scmp.eq.s32.totalorder %s20, 2
      %p96 = scmp.ne.s32.totalorder %s91, %s93
      %p97 = scmp.eq.s32.totalorder %s20, 0
      %p98 = por %p96, %p97
      %p99 = scmp.ne.s32.totalorder %s91, %s93
      %p100 = scmp.eq.s32.totalorder %s25, 2
      %p101 = por %p99, %p100
      %p102 = scmp.ne.s32.totalorder %s93, %s94
      %p103 = scmp.eq.s32.totalorder %s25, 0
      %p104 = por %p102, %p103
      %p105 = scmp.ne.s32.totalorder %s93, %s94
      %p106 = scmp.eq.s32.totalorder %s26, 2
      %p107 = por %p105, %p106
      %p109 = scmp.ne.s32.totalorder %s94, %s108
      %p110 = scmp.eq.s32.totalorder %s26, 0
      %p111 = por %p109, %p110
      %s113 = sadd.s32 %s112, 1
      %p116 = scmp.eq.s32.totalorder %s20, 2
      %p117 = scmp.ne.s32.totalorder %s112, %s114
      %p118 = scmp.eq.s32.totalorder %s20, 0
      %p119 = por %p117, %p118
      %p120 = scmp.ne.s32.totalorder %s112, %s114
      %p121 = scmp.eq.s32.totalorder %s25, 2
      %p122 = por %p120, %p121
      %p123 = scmp.ne.s32.totalorder %s114, %s115
      %p124 = scmp.eq.s32.totalorder %s25, 0
      %p125 = por %p123, %p124
      %p126 = scmp.ne.s32.totalorder %s114, %s115
      %p127 = scmp.eq.s32.totalorder %s26, 2
      %p128 = por %p126, %p127
      %p130 = scmp.ne.s32.totalorder %s115, %s129
      %p131 = scmp.eq.s32.totalorder %s26, 0
      %p132 = por %p130, %p131
      %s133 = ssub.s32 %s20, %s27
      %p134 = scmp.eq.s32.totalorder %s133, 0
      %s136 = sadd.s32 %s135, 1
      %s137 = scalar_select %p134, %s135, %s136
      %p140 = pneg %p134
      %p141 = scmp.eq.s32.totalorder %s20, 2
      %p142 = por %p140, %p141
      %p143 = scmp.ne.s32.totalorder %s135, %s138
      %p144 = scmp.eq.s32.totalorder %s20, 0
      %p145 = por %p143, %p144
      %p146 = scmp.ne.s32.totalorder %s135, %s138
      %p147 = scmp.eq.s32.totalorder %s25, 2
      %p148 = por %p146, %p147
      %p149 = scmp.ne.s32.totalorder %s138, %s139
      %p150 = scmp.eq.s32.totalorder %s25, 0
      %p151 = por %p149, %p150
      %p152 = scmp.ne.s32.totalorder %s138, %s139
      %p153 = scmp.eq.s32.totalorder %s26, 2
      %p154 = por %p152, %p153
      %p156 = scmp.ne.s32.totalorder %s139, %s155
      %p157 = scmp.eq.s32.totalorder %s26, 0
      %p158 = por %p156, %p157
      %s159 = ssub.s32 %s20, %s27
      %p160 = scmp.eq.s32.totalorder %s159, 0
      %s162 = sadd.s32 %s161, 1
      %s163 = scalar_select %p160, %s161, %s162
      %p166 = pneg %p160
      %p167 = scmp.eq.s32.totalorder %s20, 2
      %p168 = por %p166, %p167
      %p169 = scmp.ne.s32.totalorder %s161, %s164
      %p170 = scmp.eq.s32.totalorder %s20, 0
      %p171 = por %p169, %p170
      %p172 = scmp.ne.s32.totalorder %s161, %s164
      %p173 = scmp.eq.s32.totalorder %s25, 2
      %p174 = por %p172, %p173
      %p175 = scmp.ne.s32.totalorder %s164, %s165
      %p176 = scmp.eq.s32.totalorder %s25, 0
      %p177 = por %p175, %p176
      %p178 = scmp.ne.s32.totalorder %s164, %s165
      %p179 = scmp.eq.s32.totalorder %s26, 2
      %p180 = por %p178, %p179
      %p182 = scmp.ne.s32.totalorder %s165, %s181
      %p183 = scmp.eq.s32.totalorder %s26, 0
      %p184 = por %p182, %p183
      %s185 = ssub.s32 %s20, %s27
      %p186 = scmp.eq.s32.totalorder %s185, 0
      %s188 = sadd.s32 %s187, 1
      %s189 = scalar_select %p186, %s187, %s188
      %p192 = pneg %p186
      %p193 = scmp.eq.s32.totalorder %s20, 2
      %p194 = por %p192, %p193
      %p195 = scmp.ne.s32.totalorder %s187, %s190
      %p196 = scmp.eq.s32.totalorder %s20, 0
      %p197 = por %p195, %p196
      %p198 = scmp.ne.s32.totalorder %s187, %s190
      %p199 = scmp.eq.s32.totalorder %s25, 2
      %p200 = por %p198, %p199
      %p201 = scmp.ne.s32.totalorder %s190, %s191
      %p202 = scmp.eq.s32.totalorder %s25, 0
      %p203 = por %p201, %p202
      %p204 = scmp.ne.s32.totalorder %s190, %s191
      %p205 = scmp.eq.s32.totalorder %s26, 2
      %p206 = por %p204, %p205
      %p208 = scmp.ne.s32.totalorder %s191, %s207
      %p209 = scmp.eq.s32.totalorder %s26, 0
      %p210 = por %p208, %p209
      %s211 = ssub.s32 %s20, %s27
      %p212 = scmp.eq.s32.totalorder %s211, 0
      %s214 = sadd.s32 %s213, 1
      %s215 = scalar_select %p212, %s213, %s214
      %p218 = pneg %p212
      %p219 = scmp.eq.s32.totalorder %s20, 2
      %p220 = por %p218, %p219
      %p221 = scmp.ne.s32.totalorder %s213, %s216
      %p222 = scmp.eq.s32.totalorder %s20, 0
      %p223 = por %p221, %p222
      %p224 = scmp.ne.s32.totalorder %s213, %s216
      %p225 = scmp.eq.s32.totalorder %s25, 2
      %p226 = por %p224, %p225
      %p227 = scmp.ne.s32.totalorder %s216, %s217
      %p228 = scmp.eq.s32.totalorder %s25, 0
      %p229 = por %p227, %p228
      %p230 = scmp.ne.s32.totalorder %s216, %s217
      %p231 = scmp.eq.s32.totalorder %s26, 2
      %p232 = por %p230, %p231
      %p234 = scmp.ne.s32.totalorder %s217, %s233
      %p235 = scmp.eq.s32.totalorder %s26, 0
      %p236 = por %p234, %p235
      %p237 = scmp.le.s32.totalorder 1, %s20
      %p238 = scmp.lt.s32.totalorder %s20, 4
      %p239 = pnand %p237, %p238
      %p240 = pneg %p239
      // Predicated region
      $region9: #{tpu_custom_call.1} parent=5 // pred_check
        _
      $region10: #{tpu_custom_call.1} parent=5 // pred_check_branch
        %242 = sbr.rel (%p239) target = $region12
      $region11: #{tpu_custom_call.1} parent=5 // pred_region
        %s243 = ssub.s32 %s20, 1
        // Predicated region
        $region13: #{tpu_custom_call.1} parent=11 // pred_check
          %p244 = pneg %p41
        $region14: #{tpu_custom_call.1} parent=11 // pred_check_branch
          %246 = sbr.rel (%p244) target = $region16
        $region15: #{tpu_custom_call.1} parent=11 // pred_region
          %s248 = ssub.s32 7168, 7168
          %249 = vsyncadd [#allocation3], %s248
          %s250 = sshll.u32 [#allocation2], 4
          %s251 = int_to_ptr.vmem [resolvable:$true] %s250
          %256 = dma.hbm_to_vmem [thread:$0]  %s0, 7168, %s251, [#allocation3], 1024, 1024, 64
        $region16: #{tpu_custom_call.1} parent=11 // pred_fallthru
          _
        // Predicated region
        $region17: #{tpu_custom_call.1} parent=11 // pred_check
          %p257 = pneg %p62
        $region18: #{tpu_custom_call.1} parent=11 // pred_check_branch
          %259 = sbr.rel (%p257) target = $region20
        $region19: #{tpu_custom_call.1} parent=11 // pred_region
          %s261 = ssub.s32 128, 128
          %262 = vsyncadd [#allocation6], %s261
          %s264 = sshll.u32 [#allocation5], 4
          %s265 = int_to_ptr.vmem [resolvable:$true] %s264
          %267 = dma.hbm_to_vmem [thread:$0]  %s1, 128, %s265, [#allocation6]
        $region20: #{tpu_custom_call.1} parent=11 // pred_fallthru
          _
        // Predicated region
        $region21: #{tpu_custom_call.1} parent=11 // pred_check
          %p268 = pneg %p83
        $region22: #{tpu_custom_call.1} parent=11 // pred_check_branch
          %270 = sbr.rel (%p268) target = $region24
        $region23: #{tpu_custom_call.1} parent=11 // pred_region
          %s272 = ssub.s32 15360, 15360
          %273 = vsyncadd [#allocation6], %s272
          %s274 = sshll.u32 [#allocation7], 4
          %s275 = int_to_ptr.vmem [resolvable:$true] %s274
          %280 = dma.hbm_to_vmem [thread:$0]  %s2, 15360, %s275, [#allocation6], 128, 128, 8
        $region24: #{tpu_custom_call.1} parent=11 // pred_fallthru
          _
        // Predicated region
        $region25: #{tpu_custom_call.1} parent=11 // pred_check
          %p281 = pneg %p104
        $region26: #{tpu_custom_call.1} parent=11 // pred_check_branch
          %283 = sbr.rel (%p281) target = $region28
        $region27: #{tpu_custom_call.1} parent=11 // pred_region
          _
        $region28: #{tpu_custom_call.1} parent=11 // pred_fallthru
          _
        // Predicated region
        $region29: #{tpu_custom_call.1} parent=11 // pred_check
          %p284 = pneg %p125
        $region30: #{tpu_custom_call.1} parent=11 // pred_check_branch
          %286 = sbr.rel (%p284) target = $region32
        $region31: #{tpu_custom_call.1} parent=11 // pred_region
          %s288 = ssub.s32 32, 32
          %289 = vsyncadd [#allocation9], %s288
          %s291 = sshll.u32 [#allocation8], 4
          %s292 = int_to_ptr.vmem [resolvable:$true] %s291
          %294 = dma.hbm_to_vmem [thread:$0]  %s4, 32, %s292, [#allocation9]
        $region32: #{tpu_custom_call.1} parent=11 // pred_fallthru
          _
      $region12: #{tpu_custom_call.1} parent=5 // pred_fallthru
        _
      %p295 = scmp.lt.s32.totalorder %s20, 3
      // Predicated region
      $region33: #{tpu_custom_call.1} parent=5 // pred_check
        %p296 = pneg %p295
      $region34: #{tpu_custom_call.1} parent=5 // pred_check_branch
        %298 = sbr.rel (%p296) target = $region36
      $region35: #{tpu_custom_call.1} parent=5 // pred_region
        // Predicated region
        $region37: #{tpu_custom_call.1} parent=35 // pred_check
          %p299 = pneg %p145
        $region38: #{tpu_custom_call.1} parent=35 // pred_check_branch
          %301 = sbr.rel (%p299) target = $region40
        $region39: #{tpu_custom_call.1} parent=35 // pred_region
          %s302 = sand.u32 %s20, 1
          %s303 = scalar_lea.sflag [#allocation3], %s302
          %s304 = sand.u32 %s135, 1
          %s305 = smul.addr %s304, 512
          %s306 = scalar_lea.vmem [#allocation10], %s305
          %s307 = smul.u32 4, %s20
          %s309 = ssub.s32 8192, 8192
          %310 = vsyncadd %s303, %s309
          %s311 = smul.addr %s307, 64
          %s312 = scalar_lea.hbm %s5, %s311
          %s313 = sshll.u32 %s306, 4
          %s314 = int_to_ptr.vmem [resolvable:$true] %s313
          %319 = dma.hbm_to_vmem [thread:$0]  %s312, 8192, %s314, %s303, 768, 256, 16
        $region40: #{tpu_custom_call.1} parent=35 // pred_fallthru
          _
        // Predicated region
        $region41: #{tpu_custom_call.1} parent=35 // pred_check
          %p320 = pneg %p171
        $region42: #{tpu_custom_call.1} parent=35 // pred_check_branch
          %322 = sbr.rel (%p320) target = $region44
        $region43: #{tpu_custom_call.1} parent=35 // pred_region
          %s323 = smul.u32 4, %s20
          %p324 = scmp.lt.s32.totalorder %s323, 11
          %s325 = scalar_select %p324, %s323, 11
          %s326 = scalar_lea.vmem %s6, %s325
          %s327 = smul.u32 4, %s20
        $region44: #{tpu_custom_call.1} parent=35 // pred_fallthru
          _
        // Predicated region
        $region45: #{tpu_custom_call.1} parent=35 // pred_check
          %p328 = pneg %p197
        $region46: #{tpu_custom_call.1} parent=35 // pred_check_branch
          %330 = sbr.rel (%p328) target = $region48
        $region47: #{tpu_custom_call.1} parent=35 // pred_region
          %s331 = smul.u32 4, %s20
          %p332 = scmp.lt.s32.totalorder %s331, 11
          %s333 = scalar_select %p332, %s331, 11
          %s334 = scalar_lea.vmem %s7, %s333
          %s335 = smul.u32 4, %s20
        $region48: #{tpu_custom_call.1} parent=35 // pred_fallthru
          _
      $region36: #{tpu_custom_call.1} parent=5 // pred_fallthru
        _
      %p336 = scmp.le.s32.totalorder 1, %s20
      %p337 = scmp.lt.s32.totalorder %s20, 4
      %p338 = pnand %p336, %p337
      %p339 = pneg %p338
      // Predicated region
      $region49: #{tpu_custom_call.1} parent=5 // pred_check
        _
      $region50: #{tpu_custom_call.1} parent=5 // pred_check_branch
        %341 = sbr.rel (%p338) target = $region52
      $region51: #{tpu_custom_call.1} parent=5 // pred_region
        %s342 = ssub.s32 %s20, 1
        // Predicated region
        $region53: #{tpu_custom_call.1} parent=51 // pred_check
          %p343 = pneg %p41
        $region54: #{tpu_custom_call.1} parent=51 // pred_check_branch
          %345 = sbr.rel (%p343) target = $region56
        $region55: #{tpu_custom_call.1} parent=51 // pred_region
          %346 = dma.done [#allocation3], 7168
        $region56: #{tpu_custom_call.1} parent=51 // pred_fallthru
          _
        // Predicated region
        $region57: #{tpu_custom_call.1} parent=51 // pred_check
          %p347 = pneg %p62
        $region58: #{tpu_custom_call.1} parent=51 // pred_check_branch
          %349 = sbr.rel (%p347) target = $region60
        $region59: #{tpu_custom_call.1} parent=51 // pred_region
          %350 = dma.done [#allocation6], 128
        $region60: #{tpu_custom_call.1} parent=51 // pred_fallthru
          _
        // Predicated region
        $region61: #{tpu_custom_call.1} parent=51 // pred_check
          %p351 = pneg %p83
        $region62: #{tpu_custom_call.1} parent=51 // pred_check_branch
          %353 = sbr.rel (%p351) target = $region64
        $region63: #{tpu_custom_call.1} parent=51 // pred_region
          %354 = dma.done [#allocation6], 15360
        $region64: #{tpu_custom_call.1} parent=51 // pred_fallthru
          _
        // Predicated region
        $region65: #{tpu_custom_call.1} parent=51 // pred_check
          %p355 = pneg %p125
        $region66: #{tpu_custom_call.1} parent=51 // pred_check_branch
          %357 = sbr.rel (%p355) target = $region68
        $region67: #{tpu_custom_call.1} parent=51 // pred_region
          %358 = dma.done [#allocation9], 32
        $region68: #{tpu_custom_call.1} parent=51 // pred_fallthru
          _
        %s359 = sand.u32 %s25, 1
        %s360 = scalar_lea.sflag [#allocation3], %s359
        %s361 = sand.u32 %s138, 1
        %s362 = smul.addr %s361, 512
        %s363 = scalar_lea.vmem [#allocation10], %s362
        // Predicated region
        $region69: #{tpu_custom_call.1} parent=51 // pred_check
          %p364 = pneg %p151
        $region70: #{tpu_custom_call.1} parent=51 // pred_check_branch
          %366 = sbr.rel (%p364) target = $region72
        $region71: #{tpu_custom_call.1} parent=51 // pred_region
          %367 = dma.done %s360, 8192
        $region72: #{tpu_custom_call.1} parent=51 // pred_fallthru
          _
        %p368 = pneg %p41
        %p369 = pneg %p38
        %p370 = pneg %p62
        %p371 = pneg %p59
        %p372 = pneg %p83
        %p373 = pneg %p80
        %p374 = pneg %p104
        %p375 = pneg %p101
        %p376 = pneg %p125
        %p377 = pneg %p122
        %s378 = sand.u32 %s25, 1
        %s379 = scalar_lea.sflag [#allocation3], %s378
        %s380 = sand.u32 %s138, 1
        %s381 = smul.addr %s380, 512
        %s382 = scalar_lea.vmem [#allocation10], %s381
        %p383 = pneg %p151
        %p384 = pneg %p148
        %s385 = smul.u32 4, %s25
        %p386 = scmp.lt.s32.totalorder %s385, 11
        %s387 = scalar_select %p386, %s385, 11
        %s388 = scalar_lea.vmem %s6, %s387
        %p389 = pneg %p177
        %p390 = pneg %p174
        %s391 = smul.u32 4, %s25
        %p392 = scmp.lt.s32.totalorder %s391, 11
        %s393 = scalar_select %p392, %s391, 11
        %s394 = scalar_lea.vmem %s7, %s393
        %p395 = pneg %p203
        %p396 = pneg %p200
        %p397 = pneg %p229
        %p398 = pneg %p226
        %s399 = sand.u32 %s216, 1
        %s400 = scalar_lea.sflag [#allocation4], %s399
        %s401 = sand.u32 %s216, 1
        %s402 = smul.addr %s401, 224
        %s403 = scalar_lea.vmem [#allocation11], %s402
        %s404 = smul.u32 4, %s25
        %s405 = smul.u32 4, %s25
        %p406 = scmp.lt.s32.totalorder %s405, 11
        %s407 = scalar_select %p406, %s405, 11
        %s408 = scalar_lea.vmem %s6, %s407
        %s409 = smul.u32 4, %s25
        %s410 = smul.u32 4, %s25
        %p411 = scmp.lt.s32.totalorder %s410, 11
        %s412 = scalar_select %p411, %s410, 11
        %s413 = scalar_lea.vmem %s7, %s412
        %s414 = smul.u32 4, %s25
        %s415 = smul.u32 4, %s25
        %v417 = vld [vmem:[#allocation2] sm:$0xff]
        %v418 = vld [vmem:[#allocation2 + $0x8] sm:$0xff]
        %v419 = vld [vmem:[#allocation2 + $0x10] sm:$0xff]
        %v420 = vld [vmem:[#allocation2 + $0x18] sm:$0xff]
        %v421 = vld [vmem:[#allocation2 + $0x20] sm:$0xff]
        %v422 = vld [vmem:[#allocation2 + $0x28] sm:$0xff]
        %v423 = vld [vmem:[#allocation2 + $0x30] sm:$0xff]
        %v424 = vld [vmem:[#allocation2 + $0x38] sm:$0xff]
        %v425 = vld [vmem:[#allocation2 + $0x40] sm:$0xff]
        %v426 = vld [vmem:[#allocation2 + $0x48] sm:$0xff]
        %v427 = vld [vmem:[#allocation2 + $0x50] sm:$0xff]
        %v428 = vld [vmem:[#allocation2 + $0x58] sm:$0xff]
        %v429 = vld [vmem:[#allocation2 + $0x60] sm:$0xff]
        %v430 = vld [vmem:[#allocation2 + $0x68] sm:$0xff]
        %v431 = vld [vmem:[#allocation2 + $0x70] sm:$0xff]
        %v432 = vld [vmem:[#allocation2 + $0x78] sm:$0xff]
        %v433 = vld [vmem:[#allocation2 + $0x80] sm:$0xff]
        %v434 = vld [vmem:[#allocation2 + $0x88] sm:$0xff]
        %v435 = vld [vmem:[#allocation2 + $0x90] sm:$0xff]
        %v436 = vld [vmem:[#allocation2 + $0x98] sm:$0xff]
        %v437 = vld [vmem:[#allocation2 + $0xa0] sm:$0xff]
        %v438 = vld [vmem:[#allocation2 + $0xa8] sm:$0xff]
        %v439 = vld [vmem:[#allocation2 + $0xb0] sm:$0xff]
        %v440 = vld [vmem:[#allocation2 + $0xb8] sm:$0xff]
        %v441 = vld [vmem:[#allocation2 + $0xc0] sm:$0xff]
        %v442 = vld [vmem:[#allocation2 + $0xc8] sm:$0xff]
        %v443 = vld [vmem:[#allocation2 + $0xd0] sm:$0xff]
        %v444 = vld [vmem:[#allocation2 + $0xd8] sm:$0xff]
        %v445 = vld [vmem:[#allocation2 + $0xe0] sm:$0xff]
        %v446 = vld [vmem:[#allocation2 + $0xe8] sm:$0xff]
        %v447 = vld [vmem:[#allocation2 + $0xf0] sm:$0xff]
        %v448 = vld [vmem:[#allocation2 + $0xf8] sm:$0xff]
        %v449 = vld [vmem:[#allocation2 + $0x100] sm:$0xff]
        %v450 = vld [vmem:[#allocation2 + $0x108] sm:$0xff]
        %v451 = vld [vmem:[#allocation2 + $0x110] sm:$0xff]
        %v452 = vld [vmem:[#allocation2 + $0x118] sm:$0xff]
        %v453 = vld [vmem:[#allocation2 + $0x120] sm:$0xff]
        %v454 = vld [vmem:[#allocation2 + $0x128] sm:$0xff]
        %v455 = vld [vmem:[#allocation2 + $0x130] sm:$0xff]
        %v456 = vld [vmem:[#allocation2 + $0x138] sm:$0xff]
        %v457 = vld [vmem:[#allocation2 + $0x140] sm:$0xff]
        %v458 = vld [vmem:[#allocation2 + $0x148] sm:$0xff]
        %v459 = vld [vmem:[#allocation2 + $0x150] sm:$0xff]
        %v460 = vld [vmem:[#allocation2 + $0x158] sm:$0xff]
        %v461 = vld [vmem:[#allocation2 + $0x160] sm:$0xff]
        %v462 = vld [vmem:[#allocation2 + $0x168] sm:$0xff]
        %v463 = vld [vmem:[#allocation2 + $0x170] sm:$0xff]
        %v464 = vld [vmem:[#allocation2 + $0x178] sm:$0xff]
        %v465 = vld [vmem:[#allocation2 + $0x180] sm:$0xff]
        %v466 = vld [vmem:[#allocation2 + $0x188] sm:$0xff]
        %v467 = vld [vmem:[#allocation2 + $0x190] sm:$0xff]
        %v468 = vld [vmem:[#allocation2 + $0x198] sm:$0xff]
        %v469 = vld [vmem:[#allocation2 + $0x1a0] sm:$0xff]
        %v470 = vld [vmem:[#allocation2 + $0x1a8] sm:$0xff]
        %v471 = vld [vmem:[#allocation2 + $0x1b0] sm:$0xff]
        %v472 = vld [vmem:[#allocation2 + $0x1b8] sm:$0xff]
        %v473 = vld [vmem:[#allocation5] sm:$0xff]
        %v474 = vxor.u32 %v473, 2147483648
        %v475 = vmul.f32 %v474, 1.442695
        %v476 = vpow.pop %v475
        %v477 = vadd.f32 %v476, 1.0
        %v478 = vrcp.pop %v477
        %v479 = vmul.f32 1.0, %v478
        %v481 = vlaneseq
        %v482 = vshrl.u32 %v481, 7
        %v483 = vsub.s32 0, %v482
        %v484 = vrot.slane %v479, %v483
        %v485 = vlaneseq
        %v486 = vshrl.u32 %v485, 7
        %v487 = vsub.s32 1, %v486
        %v488 = vrot.slane %v479, %v487
        %v489 = vlaneseq
        %v490 = vshrl.u32 %v489, 7
        %v491 = vsub.s32 2, %v490
        %v492 = vrot.slane %v479, %v491
        %v493 = vlaneseq
        %v494 = vshrl.u32 %v493, 7
        %v495 = vsub.s32 3, %v494
        %v496 = vrot.slane %v479, %v495
        %v497 = vlaneseq
        %v498 = vshrl.u32 %v497, 7
        %v499 = vsub.s32 4, %v498
        %v500 = vrot.slane %v479, %v499
        %v501 = vlaneseq
        %v502 = vshrl.u32 %v501, 7
        %v503 = vsub.s32 5, %v502
        %v504 = vrot.slane %v479, %v503
        %v505 = vlaneseq
        %v506 = vshrl.u32 %v505, 7
        %v507 = vsub.s32 6, %v506
        %v508 = vrot.slane %v479, %v507
        %v509 = vlaneseq
        %v510 = vshrl.u32 %v509, 7
        %v511 = vsub.s32 7, %v510
        %v512 = vrot.slane %v479, %v511
        %v521 = vmul.f32 %v484, %v417
        %v522 = vmul.f32 %v488, %v418
        %v523 = vmul.f32 %v492, %v419
        %v524 = vmul.f32 %v496, %v420
        %v525 = vmul.f32 %v500, %v421
        %v526 = vmul.f32 %v504, %v422
        %v527 = vmul.f32 %v508, %v423
        %v528 = vmul.f32 %v512, %v424
        %v529 = vmul.f32 %v484, %v425
        %v530 = vmul.f32 %v488, %v426
        %v531 = vmul.f32 %v492, %v427
        %v532 = vmul.f32 %v496, %v428
        %v533 = vmul.f32 %v500, %v429
        %v534 = vmul.f32 %v504, %v430
        %v535 = vmul.f32 %v508, %v431
        %v536 = vmul.f32 %v512, %v432
        %v537 = vmul.f32 %v484, %v433
        %v538 = vmul.f32 %v488, %v434
        %v539 = vmul.f32 %v492, %v435
        %v540 = vmul.f32 %v496, %v436
        %v541 = vmul.f32 %v500, %v437
        %v542 = vmul.f32 %v504, %v438
        %v543 = vmul.f32 %v508, %v439
        %v544 = vmul.f32 %v512, %v440
        %v545 = vmul.f32 %v484, %v441
        %v546 = vmul.f32 %v488, %v442
        %v547 = vmul.f32 %v492, %v443
        %v548 = vmul.f32 %v496, %v444
        %v549 = vmul.f32 %v500, %v445
        %v550 = vmul.f32 %v504, %v446
        %v551 = vmul.f32 %v508, %v447
        %v552 = vmul.f32 %v512, %v448
        %v553 = vmul.f32 %v484, %v449
        %v554 = vmul.f32 %v488, %v450
        %v555 = vmul.f32 %v492, %v451
        %v556 = vmul.f32 %v496, %v452
        %v557 = vmul.f32 %v500, %v453
        %v558 = vmul.f32 %v504, %v454
        %v559 = vmul.f32 %v508, %v455
        %v560 = vmul.f32 %v512, %v456
        %v561 = vmul.f32 %v484, %v457
        %v562 = vmul.f32 %v488, %v458
        %v563 = vmul.f32 %v492, %v459
        %v564 = vmul.f32 %v496, %v460
        %v565 = vmul.f32 %v500, %v461
        %v566 = vmul.f32 %v504, %v462
        %v567 = vmul.f32 %v508, %v463
        %v568 = vmul.f32 %v512, %v464
        %v569 = vmul.f32 %v484, %v465
        %v570 = vmul.f32 %v488, %v466
        %v571 = vmul.f32 %v492, %v467
        %v572 = vmul.f32 %v496, %v468
        %v573 = vmul.f32 %v500, %v469
        %v574 = vmul.f32 %v504, %v470
        %v575 = vmul.f32 %v508, %v471
        %v576 = vmul.f32 %v512, %v472
        %v577 = vpack.c.bf16 %v529, %v521
        %v578 = vpack.c.bf16 %v530, %v522
        %v579 = vpack.c.bf16 %v531, %v523
        %v580 = vpack.c.bf16 %v532, %v524
        %v581 = vpack.c.bf16 %v533, %v525
        %v582 = vpack.c.bf16 %v534, %v526
        %v583 = vpack.c.bf16 %v535, %v527
        %v584 = vpack.c.bf16 %v536, %v528
        %v585 = vpack.c.bf16 %v545, %v537
        %v586 = vpack.c.bf16 %v546, %v538
        %v587 = vpack.c.bf16 %v547, %v539
        %v588 = vpack.c.bf16 %v548, %v540
        %v589 = vpack.c.bf16 %v549, %v541
        %v590 = vpack.c.bf16 %v550, %v542
        %v591 = vpack.c.bf16 %v551, %v543
        %v592 = vpack.c.bf16 %v552, %v544
        %v593 = vpack.c.bf16 %v561, %v553
        %v594 = vpack.c.bf16 %v562, %v554
        %v595 = vpack.c.bf16 %v563, %v555
        %v596 = vpack.c.bf16 %v564, %v556
        %v597 = vpack.c.bf16 %v565, %v557
        %v598 = vpack.c.bf16 %v566, %v558
        %v599 = vpack.c.bf16 %v567, %v559
        %v600 = vpack.c.bf16 %v568, %v560
        %v601 = vpack.c.bf16 %v569, %v569
        %v602 = vpack.c.bf16 %v570, %v570
        %v603 = vpack.c.bf16 %v571, %v571
        %v604 = vpack.c.bf16 %v572, %v572
        %v605 = vpack.c.bf16 %v573, %v573
        %v606 = vpack.c.bf16 %v574, %v574
        %v607 = vpack.c.bf16 %v575, %v575
        %v608 = vpack.c.bf16 %v576, %v576
        %v609 = vld [vmem:[#allocation7] sm:$0xff]
        %v610 = vld [vmem:[#allocation7 + $0x8] sm:$0xff]
        %v611 = vld [vmem:[#allocation7 + $0x10] sm:$0xff]
        %v612 = vld [vmem:[#allocation7 + $0x18] sm:$0xff]
        %v613 = vld [vmem:[#allocation7 + $0x20] sm:$0xff]
        %v614 = vld [vmem:[#allocation7 + $0x28] sm:$0xff]
        %v615 = vld [vmem:[#allocation7 + $0x30] sm:$0xff]
        %v616 = vld [vmem:[#allocation7 + $0x38] sm:$0xff]
        %v617 = vld [vmem:[#allocation7 + $0x40] sm:$0xff]
        %v618 = vld [vmem:[#allocation7 + $0x48] sm:$0xff]
        %v619 = vld [vmem:[#allocation7 + $0x50] sm:$0xff]
        %v620 = vld [vmem:[#allocation7 + $0x58] sm:$0xff]
        %v621 = vld [vmem:[#allocation7 + $0x60] sm:$0xff]
        %v622 = vld [vmem:[#allocation7 + $0x68] sm:$0xff]
        %v623 = vld [vmem:[#allocation7 + $0x70] sm:$0xff]
        %v624 = vld [vmem:[#allocation7 + $0x78] sm:$0xff]
        %v625 = vld [vmem:[#allocation7 + $0x80] sm:$0xff]
        %v626 = vld [vmem:[#allocation7 + $0x88] sm:$0xff]
        %v627 = vld [vmem:[#allocation7 + $0x90] sm:$0xff]
        %v628 = vld [vmem:[#allocation7 + $0x98] sm:$0xff]
        %v629 = vld [vmem:[#allocation7 + $0xa0] sm:$0xff]
        %v630 = vld [vmem:[#allocation7 + $0xa8] sm:$0xff]
        %v631 = vld [vmem:[#allocation7 + $0xb0] sm:$0xff]
        %v632 = vld [vmem:[#allocation7 + $0xb8] sm:$0xff]
        %v633 = vld [vmem:[#allocation7 + $0xc0] sm:$0xff]
        %v634 = vld [vmem:[#allocation7 + $0xc8] sm:$0xff]
        %v635 = vld [vmem:[#allocation7 + $0xd0] sm:$0xff]
        %v636 = vld [vmem:[#allocation7 + $0xd8] sm:$0xff]
        %v637 = vld [vmem:[#allocation7 + $0xe0] sm:$0xff]
        %v638 = vld [vmem:[#allocation7 + $0xe8] sm:$0xff]
        %v639 = vld [vmem:[#allocation7 + $0xf0] sm:$0xff]
        %v640 = vld [vmem:[#allocation7 + $0xf8] sm:$0xff]
        %v641 = vld [vmem:[#allocation7 + $0x100] sm:$0xff]
        %v642 = vld [vmem:[#allocation7 + $0x108] sm:$0xff]
        %v643 = vld [vmem:[#allocation7 + $0x110] sm:$0xff]
        %v644 = vld [vmem:[#allocation7 + $0x118] sm:$0xff]
        %v645 = vld [vmem:[#allocation7 + $0x120] sm:$0xff]
        %v646 = vld [vmem:[#allocation7 + $0x128] sm:$0xff]
        %v647 = vld [vmem:[#allocation7 + $0x130] sm:$0xff]
        %v648 = vld [vmem:[#allocation7 + $0x138] sm:$0xff]
        %v649 = vld [vmem:[#allocation7 + $0x140] sm:$0xff]
        %v650 = vld [vmem:[#allocation7 + $0x148] sm:$0xff]
        %v651 = vld [vmem:[#allocation7 + $0x150] sm:$0xff]
        %v652 = vld [vmem:[#allocation7 + $0x158] sm:$0xff]
        %v653 = vld [vmem:[#allocation7 + $0x160] sm:$0xff]
        %v654 = vld [vmem:[#allocation7 + $0x168] sm:$0xff]
        %v655 = vld [vmem:[#allocation7 + $0x170] sm:$0xff]
        %v656 = vld [vmem:[#allocation7 + $0x178] sm:$0xff]
        %v657 = vld [vmem:[#allocation7 + $0x180] sm:$0xff]
        %v658 = vld [vmem:[#allocation7 + $0x188] sm:$0xff]
        %v659 = vld [vmem:[#allocation7 + $0x190] sm:$0xff]
        %v660 = vld [vmem:[#allocation7 + $0x198] sm:$0xff]
        %v661 = vld [vmem:[#allocation7 + $0x1a0] sm:$0xff]
        %v662 = vld [vmem:[#allocation7 + $0x1a8] sm:$0xff]
        %v663 = vld [vmem:[#allocation7 + $0x1b0] sm:$0xff]
        %v664 = vld [vmem:[#allocation7 + $0x1b8] sm:$0xff]
        %v665 = vld [vmem:[#allocation7 + $0x1c0] sm:$0xff]
        %v666 = vld [vmem:[#allocation7 + $0x1c8] sm:$0xff]
        %v667 = vld [vmem:[#allocation7 + $0x1d0] sm:$0xff]
        %v668 = vld [vmem:[#allocation7 + $0x1d8] sm:$0xff]
        %v669 = vld [vmem:[#allocation7 + $0x1e0] sm:$0xff]
        %v670 = vld [vmem:[#allocation7 + $0x1e8] sm:$0xff]
        %v671 = vld [vmem:[#allocation7 + $0x1f0] sm:$0xff]
        %v672 = vld [vmem:[#allocation7 + $0x1f8] sm:$0xff]
        %v673 = vld [vmem:[#allocation7 + $0x200] sm:$0xff]
        %v674 = vld [vmem:[#allocation7 + $0x208] sm:$0xff]
        %v675 = vld [vmem:[#allocation7 + $0x210] sm:$0xff]
        %v676 = vld [vmem:[#allocation7 + $0x218] sm:$0xff]
        %v677 = vld [vmem:[#allocation7 + $0x220] sm:$0xff]
        %v678 = vld [vmem:[#allocation7 + $0x228] sm:$0xff]
        %v679 = vld [vmem:[#allocation7 + $0x230] sm:$0xff]
        %v680 = vld [vmem:[#allocation7 + $0x238] sm:$0xff]
        %v681 = vld [vmem:[#allocation7 + $0x240] sm:$0xff]
        %v682 = vld [vmem:[#allocation7 + $0x248] sm:$0xff]
        %v683 = vld [vmem:[#allocation7 + $0x250] sm:$0xff]
        %v684 = vld [vmem:[#allocation7 + $0x258] sm:$0xff]
        %v685 = vld [vmem:[#allocation7 + $0x260] sm:$0xff]
        %v686 = vld [vmem:[#allocation7 + $0x268] sm:$0xff]
        %v687 = vld [vmem:[#allocation7 + $0x270] sm:$0xff]
        %v688 = vld [vmem:[#allocation7 + $0x278] sm:$0xff]
        %v689 = vld [vmem:[#allocation7 + $0x280] sm:$0xff]
        %v690 = vld [vmem:[#allocation7 + $0x288] sm:$0xff]
        %v691 = vld [vmem:[#allocation7 + $0x290] sm:$0xff]
        %v692 = vld [vmem:[#allocation7 + $0x298] sm:$0xff]
        %v693 = vld [vmem:[#allocation7 + $0x2a0] sm:$0xff]
        %v694 = vld [vmem:[#allocation7 + $0x2a8] sm:$0xff]
        %v695 = vld [vmem:[#allocation7 + $0x2b0] sm:$0xff]
        %v696 = vld [vmem:[#allocation7 + $0x2b8] sm:$0xff]
        %v697 = vld [vmem:[#allocation7 + $0x2c0] sm:$0xff]
        %v698 = vld [vmem:[#allocation7 + $0x2c8] sm:$0xff]
        %v699 = vld [vmem:[#allocation7 + $0x2d0] sm:$0xff]
        %v700 = vld [vmem:[#allocation7 + $0x2d8] sm:$0xff]
        %v701 = vld [vmem:[#allocation7 + $0x2e0] sm:$0xff]
        %v702 = vld [vmem:[#allocation7 + $0x2e8] sm:$0xff]
        %v703 = vld [vmem:[#allocation7 + $0x2f0] sm:$0xff]
        %v704 = vld [vmem:[#allocation7 + $0x2f8] sm:$0xff]
        %v705 = vld [vmem:[#allocation7 + $0x300] sm:$0xff]
        %v706 = vld [vmem:[#allocation7 + $0x308] sm:$0xff]
        %v707 = vld [vmem:[#allocation7 + $0x310] sm:$0xff]
        %v708 = vld [vmem:[#allocation7 + $0x318] sm:$0xff]
        %v709 = vld [vmem:[#allocation7 + $0x320] sm:$0xff]
        %v710 = vld [vmem:[#allocation7 + $0x328] sm:$0xff]
        %v711 = vld [vmem:[#allocation7 + $0x330] sm:$0xff]
        %v712 = vld [vmem:[#allocation7 + $0x338] sm:$0xff]
        %v713 = vld [vmem:[#allocation7 + $0x340] sm:$0xff]
        %v714 = vld [vmem:[#allocation7 + $0x348] sm:$0xff]
        %v715 = vld [vmem:[#allocation7 + $0x350] sm:$0xff]
        %v716 = vld [vmem:[#allocation7 + $0x358] sm:$0xff]
        %v717 = vld [vmem:[#allocation7 + $0x360] sm:$0xff]
        %v718 = vld [vmem:[#allocation7 + $0x368] sm:$0xff]
        %v719 = vld [vmem:[#allocation7 + $0x370] sm:$0xff]
        %v720 = vld [vmem:[#allocation7 + $0x378] sm:$0xff]
        %v721 = vld [vmem:[#allocation7 + $0x380] sm:$0xff]
        %v722 = vld [vmem:[#allocation7 + $0x388] sm:$0xff]
        %v723 = vld [vmem:[#allocation7 + $0x390] sm:$0xff]
        %v724 = vld [vmem:[#allocation7 + $0x398] sm:$0xff]
        %v725 = vld [vmem:[#allocation7 + $0x3a0] sm:$0xff]
        %v726 = vld [vmem:[#allocation7 + $0x3a8] sm:$0xff]
        %v727 = vld [vmem:[#allocation7 + $0x3b0] sm:$0xff]
        %v728 = vld [vmem:[#allocation7 + $0x3b8] sm:$0xff]
        %v849 = vunpack.c.l.b16 %v609
        %v850 = vunpack.c.h.b16 %v609
        %v851 = vunpack.c.l.b16 %v610
        %v852 = vunpack.c.h.b16 %v610
        %v853 = vunpack.c.l.b16 %v611
        %v854 = vunpack.c.h.b16 %v611
        %v855 = vunpack.c.l.b16 %v612
        %v856 = vunpack.c.h.b16 %v612
        %v857 = vunpack.c.l.b16 %v613
        %v858 = vunpack.c.h.b16 %v613
        %v859 = vunpack.c.l.b16 %v614
        %v860 = vunpack.c.h.b16 %v614
        %v861 = vunpack.c.l.b16 %v615
        %v862 = vunpack.c.h.b16 %v615
        %v863 = vunpack.c.l.b16 %v616
        %v864 = vunpack.c.h.b16 %v616
        %v865 = vunpack.c.l.b16 %v617
        %v866 = vunpack.c.h.b16 %v617
        %v867 = vunpack.c.l.b16 %v618
        %v868 = vunpack.c.h.b16 %v618
        %v869 = vunpack.c.l.b16 %v619
        %v870 = vunpack.c.h.b16 %v619
        %v871 = vunpack.c.l.b16 %v620
        %v872 = vunpack.c.h.b16 %v620
        %v873 = vunpack.c.l.b16 %v621
        %v874 = vunpack.c.h.b16 %v621
        %v875 = vunpack.c.l.b16 %v622
        %v876 = vunpack.c.h.b16 %v622
        %v877 = vunpack.c.l.b16 %v623
        %v878 = vunpack.c.h.b16 %v623
        %v879 = vunpack.c.l.b16 %v624
        %v880 = vunpack.c.h.b16 %v624
        %v881 = vunpack.c.l.b16 %v625
        %v882 = vunpack.c.h.b16 %v625
        %v883 = vunpack.c.l.b16 %v626
        %v884 = vunpack.c.h.b16 %v626
        %v885 = vunpack.c.l.b16 %v627
        %v886 = vunpack.c.h.b16 %v627
        %v887 = vunpack.c.l.b16 %v628
        %v888 = vunpack.c.h.b16 %v628
        %v889 = vunpack.c.l.b16 %v629
        %v890 = vunpack.c.h.b16 %v629
        %v891 = vunpack.c.l.b16 %v630
        %v892 = vunpack.c.h.b16 %v630
        %v893 = vunpack.c.l.b16 %v631
        %v894 = vunpack.c.h.b16 %v631
        %v895 = vunpack.c.l.b16 %v632
        %v896 = vunpack.c.h.b16 %v632
        %v897 = vunpack.c.l.b16 %v633
        %v898 = vunpack.c.h.b16 %v633
        %v899 = vunpack.c.l.b16 %v634
        %v900 = vunpack.c.h.b16 %v634
        %v901 = vunpack.c.l.b16 %v635
        %v902 = vunpack.c.h.b16 %v635
        %v903 = vunpack.c.l.b16 %v636
        %v904 = vunpack.c.h.b16 %v636
        %v905 = vunpack.c.l.b16 %v637
        %v906 = vunpack.c.h.b16 %v637
        %v907 = vunpack.c.l.b16 %v638
        %v908 = vunpack.c.h.b16 %v638
        %v909 = vunpack.c.l.b16 %v639
        %v910 = vunpack.c.h.b16 %v639
        %v911 = vunpack.c.l.b16 %v640
        %v912 = vunpack.c.h.b16 %v640
        %v913 = vunpack.c.l.b16 %v641
        %v914 = vunpack.c.h.b16 %v641
        %v915 = vunpack.c.l.b16 %v642
        %v916 = vunpack.c.h.b16 %v642
        %v917 = vunpack.c.l.b16 %v643
        %v918 = vunpack.c.h.b16 %v643
        %v919 = vunpack.c.l.b16 %v644
        %v920 = vunpack.c.h.b16 %v644
        %v921 = vunpack.c.l.b16 %v645
        %v922 = vunpack.c.h.b16 %v645
        %v923 = vunpack.c.l.b16 %v646
        %v924 = vunpack.c.h.b16 %v646
        %v925 = vunpack.c.l.b16 %v647
        %v926 = vunpack.c.h.b16 %v647
        %v927 = vunpack.c.l.b16 %v648
        %v928 = vunpack.c.h.b16 %v648
        %v929 = vunpack.c.l.b16 %v649
        %v930 = vunpack.c.h.b16 %v649
        %v931 = vunpack.c.l.b16 %v650
        %v932 = vunpack.c.h.b16 %v650
        %v933 = vunpack.c.l.b16 %v651
        %v934 = vunpack.c.h.b16 %v651
        %v935 = vunpack.c.l.b16 %v652
        %v936 = vunpack.c.h.b16 %v652
        %v937 = vunpack.c.l.b16 %v653
        %v938 = vunpack.c.h.b16 %v653
        %v939 = vunpack.c.l.b16 %v654
        %v940 = vunpack.c.h.b16 %v654
        %v941 = vunpack.c.l.b16 %v655
        %v942 = vunpack.c.h.b16 %v655
        %v943 = vunpack.c.l.b16 %v656
        %v944 = vunpack.c.h.b16 %v656
        %v945 = vunpack.c.l.b16 %v657
        %v946 = vunpack.c.h.b16 %v657
        %v947 = vunpack.c.l.b16 %v658
        %v948 = vunpack.c.h.b16 %v658
        %v949 = vunpack.c.l.b16 %v659
        %v950 = vunpack.c.h.b16 %v659
        %v951 = vunpack.c.l.b16 %v660
        %v952 = vunpack.c.h.b16 %v660
        %v953 = vunpack.c.l.b16 %v661
        %v954 = vunpack.c.h.b16 %v661
        %v955 = vunpack.c.l.b16 %v662
        %v956 = vunpack.c.h.b16 %v662
        %v957 = vunpack.c.l.b16 %v663
        %v958 = vunpack.c.h.b16 %v663
        %v959 = vunpack.c.l.b16 %v664
        %v960 = vunpack.c.h.b16 %v664
        %v961 = vunpack.c.l.b16 %v665
        %v962 = vunpack.c.h.b16 %v665
        %v963 = vunpack.c.l.b16 %v666
        %v964 = vunpack.c.h.b16 %v666
        %v965 = vunpack.c.l.b16 %v667
        %v966 = vunpack.c.h.b16 %v667
        %v967 = vunpack.c.l.b16 %v668
        %v968 = vunpack.c.h.b16 %v668
        %v969 = vunpack.c.l.b16 %v669
        %v970 = vunpack.c.h.b16 %v669
        %v971 = vunpack.c.l.b16 %v670
        %v972 = vunpack.c.h.b16 %v670
        %v973 = vunpack.c.l.b16 %v671
        %v974 = vunpack.c.h.b16 %v671
        %v975 = vunpack.c.l.b16 %v672
        %v976 = vunpack.c.h.b16 %v672
        %v977 = vunpack.c.l.b16 %v673
        %v978 = vunpack.c.h.b16 %v673
        %v979 = vunpack.c.l.b16 %v674
        %v980 = vunpack.c.h.b16 %v674
        %v981 = vunpack.c.l.b16 %v675
        %v982 = vunpack.c.h.b16 %v675
        %v983 = vunpack.c.l.b16 %v676
        %v984 = vunpack.c.h.b16 %v676
        %v985 = vunpack.c.l.b16 %v677
        %v986 = vunpack.c.h.b16 %v677
        %v987 = vunpack.c.l.b16 %v678
        %v988 = vunpack.c.h.b16 %v678
        %v989 = vunpack.c.l.b16 %v679
        %v990 = vunpack.c.h.b16 %v679
        %v991 = vunpack.c.l.b16 %v680
        %v992 = vunpack.c.h.b16 %v680
        %v993 = vunpack.c.l.b16 %v681
        %v994 = vunpack.c.h.b16 %v681
        %v995 = vunpack.c.l.b16 %v682
        %v996 = vunpack.c.h.b16 %v682
        %v997 = vunpack.c.l.b16 %v683
        %v998 = vunpack.c.h.b16 %v683
        %v999 = vunpack.c.l.b16 %v684
        %v1000 = vunpack.c.h.b16 %v684
        %v1001 = vunpack.c.l.b16 %v685
        %v1002 = vunpack.c.h.b16 %v685
        %v1003 = vunpack.c.l.b16 %v686
        %v1004 = vunpack.c.h.b16 %v686
        %v1005 = vunpack.c.l.b16 %v687
        %v1006 = vunpack.c.h.b16 %v687
        %v1007 = vunpack.c.l.b16 %v688
        %v1008 = vunpack.c.h.b16 %v688
        %v1009 = vunpack.c.l.b16 %v689
        %v1010 = vunpack.c.h.b16 %v689
        %v1011 = vunpack.c.l.b16 %v690
        %v1012 = vunpack.c.h.b16 %v690
        %v1013 = vunpack.c.l.b16 %v691
        %v1014 = vunpack.c.h.b16 %v691
        %v1015 = vunpack.c.l.b16 %v692
        %v1016 = vunpack.c.h.b16 %v692
        %v1017 = vunpack.c.l.b16 %v693
        %v1018 = vunpack.c.h.b16 %v693
        %v1019 = vunpack.c.l.b16 %v694
        %v1020 = vunpack.c.h.b16 %v694
        %v1021 = vunpack.c.l.b16 %v695
        %v1022 = vunpack.c.h.b16 %v695
        %v1023 = vunpack.c.l.b16 %v696
        %v1024 = vunpack.c.h.b16 %v696
        %v1025 = vunpack.c.l.b16 %v697
        %v1026 = vunpack.c.h.b16 %v697
        %v1027 = vunpack.c.l.b16 %v698
        %v1028 = vunpack.c.h.b16 %v698
        %v1029 = vunpack.c.l.b16 %v699
        %v1030 = vunpack.c.h.b16 %v699
        %v1031 = vunpack.c.l.b16 %v700
        %v1032 = vunpack.c.h.b16 %v700
        %v1033 = vunpack.c.l.b16 %v701
        %v1034 = vunpack.c.h.b16 %v701
        %v1035 = vunpack.c.l.b16 %v702
        %v1036 = vunpack.c.h.b16 %v702
        %v1037 = vunpack.c.l.b16 %v703
        %v1038 = vunpack.c.h.b16 %v703
        %v1039 = vunpack.c.l.b16 %v704
        %v1040 = vunpack.c.h.b16 %v704
        %v1041 = vunpack.c.l.b16 %v705
        %v1042 = vunpack.c.h.b16 %v705
        %v1043 = vunpack.c.l.b16 %v706
        %v1044 = vunpack.c.h.b16 %v706
        %v1045 = vunpack.c.l.b16 %v707
        %v1046 = vunpack.c.h.b16 %v707
        %v1047 = vunpack.c.l.b16 %v708
        %v1048 = vunpack.c.h.b16 %v708
        %v1049 = vunpack.c.l.b16 %v709
        %v1050 = vunpack.c.h.b16 %v709
        %v1051 = vunpack.c.l.b16 %v710
        %v1052 = vunpack.c.h.b16 %v710
        %v1053 = vunpack.c.l.b16 %v711
        %v1054 = vunpack.c.h.b16 %v711
        %v1055 = vunpack.c.l.b16 %v712
        %v1056 = vunpack.c.h.b16 %v712
        %v1057 = vunpack.c.l.b16 %v713
        %v1058 = vunpack.c.h.b16 %v713
        %v1059 = vunpack.c.l.b16 %v714
        %v1060 = vunpack.c.h.b16 %v714
        %v1061 = vunpack.c.l.b16 %v715
        %v1062 = vunpack.c.h.b16 %v715
        %v1063 = vunpack.c.l.b16 %v716
        %v1064 = vunpack.c.h.b16 %v716
        %v1065 = vunpack.c.l.b16 %v717
        %v1066 = vunpack.c.h.b16 %v717
        %v1067 = vunpack.c.l.b16 %v718
        %v1068 = vunpack.c.h.b16 %v718
        %v1069 = vunpack.c.l.b16 %v719
        %v1070 = vunpack.c.h.b16 %v719
        %v1071 = vunpack.c.l.b16 %v720
        %v1072 = vunpack.c.h.b16 %v720
        %v1073 = vunpack.c.l.b16 %v721
        %v1074 = vunpack.c.h.b16 %v721
        %v1075 = vunpack.c.l.b16 %v722
        %v1076 = vunpack.c.h.b16 %v722
        %v1077 = vunpack.c.l.b16 %v723
        %v1078 = vunpack.c.h.b16 %v723
        %v1079 = vunpack.c.l.b16 %v724
        %v1080 = vunpack.c.h.b16 %v724
        %v1081 = vunpack.c.l.b16 %v725
        %v1082 = vunpack.c.h.b16 %v725
        %v1083 = vunpack.c.l.b16 %v726
        %v1084 = vunpack.c.h.b16 %v726
        %v1085 = vunpack.c.l.b16 %v727
        %v1086 = vunpack.c.h.b16 %v727
        %v1087 = vunpack.c.l.b16 %v728
        %v1088 = vunpack.c.h.b16 %v728
        %v1089 = vpack.c.b16 %v851, %v849
        %v1090 = vpack.c.b16 %v852, %v850
        %v1091 = vpack.c.b16 %v855, %v853
        %v1092 = vpack.c.b16 %v856, %v854
        %v1093 = vpack.c.b16 %v859, %v857
        %v1094 = vpack.c.b16 %v860, %v858
        %v1095 = vpack.c.b16 %v863, %v861
        %v1096 = vpack.c.b16 %v864, %v862
        %v1097 = vpack.c.b16 %v867, %v865
        %v1098 = vpack.c.b16 %v868, %v866
        %v1099 = vpack.c.b16 %v871, %v869
        %v1100 = vpack.c.b16 %v872, %v870
        %v1101 = vpack.c.b16 %v875, %v873
        %v1102 = vpack.c.b16 %v876, %v874
        %v1103 = vpack.c.b16 %v879, %v877
        %v1104 = vpack.c.b16 %v880, %v878
        %v1105 = vpack.c.b16 %v883, %v881
        %v1106 = vpack.c.b16 %v884, %v882
        %v1107 = vpack.c.b16 %v887, %v885
        %v1108 = vpack.c.b16 %v888, %v886
        %v1109 = vpack.c.b16 %v891, %v889
        %v1110 = vpack.c.b16 %v892, %v890
        %v1111 = vpack.c.b16 %v895, %v893
        %v1112 = vpack.c.b16 %v896, %v894
        %v1113 = vpack.c.b16 %v899, %v897
        %v1114 = vpack.c.b16 %v900, %v898
        %v1115 = vpack.c.b16 %v903, %v901
        %v1116 = vpack.c.b16 %v904, %v902
        %v1117 = vpack.c.b16 %v907, %v905
        %v1118 = vpack.c.b16 %v908, %v906
        %v1119 = vpack.c.b16 %v911, %v909
        %v1120 = vpack.c.b16 %v912, %v910
        %v1121 = vpack.c.b16 %v915, %v913
        %v1122 = vpack.c.b16 %v916, %v914
        %v1123 = vpack.c.b16 %v919, %v917
        %v1124 = vpack.c.b16 %v920, %v918
        %v1125 = vpack.c.b16 %v923, %v921
        %v1126 = vpack.c.b16 %v924, %v922
        %v1127 = vpack.c.b16 %v927, %v925
        %v1128 = vpack.c.b16 %v928, %v926
        %v1129 = vpack.c.b16 %v931, %v929
        %v1130 = vpack.c.b16 %v932, %v930
        %v1131 = vpack.c.b16 %v935, %v933
        %v1132 = vpack.c.b16 %v936, %v934
        %v1133 = vpack.c.b16 %v939, %v937
        %v1134 = vpack.c.b16 %v940, %v938
        %v1135 = vpack.c.b16 %v943, %v941
        %v1136 = vpack.c.b16 %v944, %v942
        %v1137 = vpack.c.b16 %v947, %v945
        %v1138 = vpack.c.b16 %v948, %v946
        %v1139 = vpack.c.b16 %v951, %v949
        %v1140 = vpack.c.b16 %v952, %v950
        %v1141 = vpack.c.b16 %v955, %v953
        %v1142 = vpack.c.b16 %v956, %v954
        %v1143 = vpack.c.b16 %v959, %v957
        %v1144 = vpack.c.b16 %v960, %v958
        %v1145 = vpack.c.b16 %v963, %v961
        %v1146 = vpack.c.b16 %v964, %v962
        %v1147 = vpack.c.b16 %v967, %v965
        %v1148 = vpack.c.b16 %v968, %v966
        %v1149 = vpack.c.b16 %v971, %v969
        %v1150 = vpack.c.b16 %v972, %v970
        %v1151 = vpack.c.b16 %v975, %v973
        %v1152 = vpack.c.b16 %v976, %v974
        %v1153 = vpack.c.b16 %v979, %v977
        %v1154 = vpack.c.b16 %v980, %v978
        %v1155 = vpack.c.b16 %v983, %v981
        %v1156 = vpack.c.b16 %v984, %v982
        %v1157 = vpack.c.b16 %v987, %v985
        %v1158 = vpack.c.b16 %v988, %v986
        %v1159 = vpack.c.b16 %v991, %v989
        %v1160 = vpack.c.b16 %v992, %v990
        %v1161 = vpack.c.b16 %v995, %v993
        %v1162 = vpack.c.b16 %v996, %v994
        %v1163 = vpack.c.b16 %v999, %v997
        %v1164 = vpack.c.b16 %v1000, %v998
        %v1165 = vpack.c.b16 %v1003, %v1001
        %v1166 = vpack.c.b16 %v1004, %v1002
        %v1167 = vpack.c.b16 %v1007, %v1005
        %v1168 = vpack.c.b16 %v1008, %v1006
        %v1169 = vpack.c.b16 %v1011, %v1009
        %v1170 = vpack.c.b16 %v1012, %v1010
        %v1171 = vpack.c.b16 %v1015, %v1013
        %v1172 = vpack.c.b16 %v1016, %v1014
        %v1173 = vpack.c.b16 %v1019, %v1017
        %v1174 = vpack.c.b16 %v1020, %v1018
        %v1175 = vpack.c.b16 %v1023, %v1021
        %v1176 = vpack.c.b16 %v1024, %v1022
        %v1177 = vpack.c.b16 %v1027, %v1025
        %v1178 = vpack.c.b16 %v1028, %v1026
        %v1179 = vpack.c.b16 %v1031, %v1029
        %v1180 = vpack.c.b16 %v1032, %v1030
        %v1181 = vpack.c.b16 %v1035, %v1033
        %v1182 = vpack.c.b16 %v1036, %v1034
        %v1183 = vpack.c.b16 %v1039, %v1037
        %v1184 = vpack.c.b16 %v1040, %v1038
        %v1185 = vpack.c.b16 %v1043, %v1041
        %v1186 = vpack.c.b16 %v1044, %v1042
        %v1187 = vpack.c.b16 %v1047, %v1045
        %v1188 = vpack.c.b16 %v1048, %v1046
        %v1189 = vpack.c.b16 %v1051, %v1049
        %v1190 = vpack.c.b16 %v1052, %v1050
        %v1191 = vpack.c.b16 %v1055, %v1053
        %v1192 = vpack.c.b16 %v1056, %v1054
        %v1193 = vpack.c.b16 %v1059, %v1057
        %v1194 = vpack.c.b16 %v1060, %v1058
        %v1195 = vpack.c.b16 %v1063, %v1061
        %v1196 = vpack.c.b16 %v1064, %v1062
        %v1197 = vpack.c.b16 %v1067, %v1065
        %v1198 = vpack.c.b16 %v1068, %v1066
        %v1199 = vpack.c.b16 %v1071, %v1069
        %v1200 = vpack.c.b16 %v1072, %v1070
        %v1201 = vpack.c.b16 %v1075, %v1073
        %v1202 = vpack.c.b16 %v1076, %v1074
        %v1203 = vpack.c.b16 %v1079, %v1077
        %v1204 = vpack.c.b16 %v1080, %v1078
        %v1205 = vpack.c.b16 %v1083, %v1081
        %v1206 = vpack.c.b16 %v1084, %v1082
        %v1207 = vpack.c.b16 %v1087, %v1085
        %v1208 = vpack.c.b16 %v1088, %v1086
        %vm1329 = vcmask 523264
        %v1331 = vsel %vm1329, %v584, 0
        %v1334 = vsel %vm1329, %v592, 0
        %v1337 = vsel %vm1329, %v600, 0
        %v1340 = vsel %vm1329, %v608, 0
        %1342 = vmatprep.subr.bf16.mxu0 %v1090
        %1343 = vmatpush1.bf16.msra.mxu0 %v1089
        %1344 = vmatprep.subr.bf16.mxu0 %v1092
        %1345 = vmatpush1.bf16.msra.mxu0 %v1091
        %1346 = vmatprep.subr.bf16.mxu0 %v1094
        %1347 = vmatpush1.bf16.msra.mxu0 %v1093
        %1348 = vmatprep.subr.bf16.mxu0 %v1096
        %1349 = vmatpush1.bf16.msra.mxu0 %v1095
        %1350 = vmatprep.subr.bf16.mxu0 %v1098
        %1351 = vmatpush1.bf16.msra.mxu0 %v1097
        %1352 = vmatprep.subr.bf16.mxu0 %v1100
        %1353 = vmatpush1.bf16.msra.mxu0 %v1099
        %1354 = vmatprep.subr.bf16.mxu0 %v1102
        %1355 = vmatpush1.bf16.msra.mxu0 %v1101
        %1356 = vmatprep.subr.bf16.mxu0 %v1104
        %1357 = vmatpush1.bf16.msra.mxu0 %v1103
        %1358 = vmatprep.subr.bf16.mxu0 %v1106
        %1359 = vmatpush1.bf16.msra.mxu0 %v1105
        %1360 = vmatprep.subr.bf16.mxu0 %v1108
        %1361 = vmatpush1.bf16.msra.mxu0 %v1107
        %1362 = vmatprep.subr.bf16.mxu0 %v1110
        %1363 = vmatpush1.bf16.msra.mxu0 %v1109
        %1364 = vmatprep.subr.bf16.mxu0 %v1112
        %1365 = vmatpush1.bf16.msra.mxu0 %v1111
        %1366 = vmatprep.subr.bf16.mxu0 %v1114
        %1367 = vmatpush1.bf16.msra.mxu0 %v1113
        %1368 = vmatprep.subr.bf16.mxu0 %v1116
        %1369 = vmatpush1.bf16.msra.mxu0 %v1115
        %1370 = vmatprep.subr.bf16.mxu0 %v1118
        %1371 = vmatpush1.bf16.msra.mxu0 %v1117
        %1372 = vmatprep.subr.bf16.mxu0 %v1120
        %1373 = vmatpush1.bf16.msra.mxu0 %v1119
        %1374 = vmatprep.mubr.bf16.mxu0 %v578
        %1375 = vmatmul.mubr.bf16.gmra.mrb[0].mxu0 %v577
        %v1376 = vpop.f32.mrb[0].mxu0
        %v1377 = vadd.f32 0.0, %v1376
        %v1378 = vpop.f32.mrb[0].mxu0
        %v1379 = vadd.f32 0.0, %v1378
        %v1380 = vpop.f32.mrb[0].mxu0
        %v1381 = vadd.f32 0.0, %v1380
        %v1382 = vpop.f32.mrb[0].mxu0
        %v1383 = vadd.f32 0.0, %v1382
        %1384 = vmatprep.mubr.bf16.mxu0 %v586
        %1385 = vmatmul.mubr.bf16.gmra.mrb[0].mxu0 %v585
        %v1386 = vpop.f32.mrb[0].mxu0
        %v1387 = vadd.f32 0.0, %v1386
        %v1388 = vpop.f32.mrb[0].mxu0
        %v1389 = vadd.f32 0.0, %v1388
        %v1390 = vpop.f32.mrb[0].mxu0
        %v1391 = vadd.f32 0.0, %v1390
        %v1392 = vpop.f32.mrb[0].mxu0
        %v1393 = vadd.f32 0.0, %v1392
        %1394 = vmatprep.mubr.bf16.mxu0 %v594
        %1395 = vmatmul.mubr.bf16.gmra.mrb[0].mxu0 %v593
        %v1396 = vpop.f32.mrb[0].mxu0
        %v1397 = vadd.f32 0.0, %v1396
        %v1398 = vpop.f32.mrb[0].mxu0
        %v1399 = vadd.f32 0.0, %v1398
        %v1400 = vpop.f32.mrb[0].mxu0
        %v1401 = vadd.f32 0.0, %v1400
        %v1402 = vpop.f32.mrb[0].mxu0
        %v1403 = vadd.f32 0.0, %v1402
        %1404 = vmatprep.mubr.bf16.mxu0 %v602
        %1405 = vmatmul.mubr.bf16.gmra.mrb[0].mxu0 %v601
        %v1406 = vpop.f32.mrb[0].mxu0
        %v1407 = vadd.f32 0.0, %v1406
        %v1408 = vpop.f32.mrb[0].mxu0
        %v1409 = vadd.f32 0.0, %v1408
        %v1410 = vpop.f32.mrb[0].mxu0
        %v1411 = vpop.f32.mrb[0].mxu0
        %1412 = vdwg.mxu0
        %1413 = vmatprep.subr.bf16.mxu0 %v1122
        %1414 = vmatpush1.bf16.msra.mxu0 %v1121
        %1415 = vmatprep.subr.bf16.mxu0 %v1124
        %1416 = vmatpush1.bf16.msra.mxu0 %v1123
        %1417 = vmatprep.subr.bf16.mxu0 %v1126
        %1418 = vmatpush1.bf16.msra.mxu0 %v1125
        %1419 = vmatprep.subr.bf16.mxu0 %v1128
        %1420 = vmatpush1.bf16.msra.mxu0 %v1127
        %1421 = vmatprep.subr.bf16.mxu0 %v1130
        %1422 = vmatpush1.bf16.msra.mxu0 %v1129
        %1423 = vmatprep.subr.bf16.mxu0 %v1132
        %1424 = vmatpush1.bf16.msra.mxu0 %v1131
        %1425 = vmatprep.subr.bf16.mxu0 %v1134
        %1426 = vmatpush1.bf16.msra.mxu0 %v1133
        %1427 = vmatprep.subr.bf16.mxu0 %v1136
        %1428 = vmatpush1.bf16.msra.mxu0 %v1135
        %1429 = vmatprep.subr.bf16.mxu0 %v1138
        %1430 = vmatpush1.bf16.msra.mxu0 %v1137
        %1431 = vmatprep.subr.bf16.mxu0 %v1140
        %1432 = vmatpush1.bf16.msra.mxu0 %v1139
        %1433 = vmatprep.subr.bf16.mxu0 %v1142
        %1434 = vmatpush1.bf16.msra.mxu0 %v1141
        %1435 = vmatprep.subr.bf16.mxu0 %v1144
        %1436 = vmatpush1.bf16.msra.mxu0 %v1143
        %1437 = vmatprep.subr.bf16.mxu0 %v1146
        %1438 = vmatpush1.bf16.msra.mxu0 %v1145
        %1439 = vmatprep.subr.bf16.mxu0 %v1148
        %1440 = vmatpush1.bf16.msra.mxu0 %v1147
        %1441 = vmatprep.subr.bf16.mxu0 %v1150
        %1442 = vmatpush1.bf16.msra.mxu0 %v1149
        %1443 = vmatprep.subr.bf16.mxu0 %v1152
        %1444 = vmatpush1.bf16.msra.mxu0 %v1151
        %1445 = vmatprep.mubr.bf16.mxu0 %v580
        %1446 = vmatmul.mubr.bf16.gmra.mrb[0].mxu0 %v579
        %v1447 = vpop.f32.mrb[0].mxu0
        %v1448 = vadd.f32 %v1377, %v1447
        %v1449 = vpop.f32.mrb[0].mxu0
        %v1450 = vadd.f32 %v1379, %v1449
        %v1451 = vpop.f32.mrb[0].mxu0
        %v1452 = vadd.f32 %v1381, %v1451
        %v1453 = vpop.f32.mrb[0].mxu0
        %v1454 = vadd.f32 %v1383, %v1453
        %1455 = vmatprep.mubr.bf16.mxu0 %v588
        %1456 = vmatmul.mubr.bf16.gmra.mrb[0].mxu0 %v587
        %v1457 = vpop.f32.mrb[0].mxu0
        %v1458 = vadd.f32 %v1387, %v1457
        %v1459 = vpop.f32.mrb[0].mxu0
        %v1460 = vadd.f32 %v1389, %v1459
        %v1461 = vpop.f32.mrb[0].mxu0
        %v1462 = vadd.f32 %v1391, %v1461
        %v1463 = vpop.f32.mrb[0].mxu0
        %v1464 = vadd.f32 %v1393, %v1463
        %1465 = vmatprep.mubr.bf16.mxu0 %v596
        %1466 = vmatmul.mubr.bf16.gmra.mrb[0].mxu0 %v595
        %v1467 = vpop.f32.mrb[0].mxu0
        %v1468 = vadd.f32 %v1397, %v1467
        %v1469 = vpop.f32.mrb[0].mxu0
        %v1470 = vadd.f32 %v1399, %v1469
        %v1471 = vpop.f32.mrb[0].mxu0
        %v1472 = vadd.f32 %v1401, %v1471
        %v1473 = vpop.f32.mrb[0].mxu0
        %v1474 = vadd.f32 %v1403, %v1473
        %1475 = vmatprep.mubr.bf16.mxu0 %v604
        %1476 = vmatmul.mubr.bf16.gmra.mrb[0].mxu0 %v603
        %v1477 = vpop.f32.mrb[0].mxu0
        %v1478 = vadd.f32 %v1407, %v1477
        %v1479 = vpop.f32.mrb[0].mxu0
        %v1480 = vadd.f32 %v1409, %v1479
        %v1481 = vpop.f32.mrb[0].mxu0
        %v1482 = vpop.f32.mrb[0].mxu0
        %1483 = vdwg.mxu0
        %1484 = vmatprep.subr.bf16.mxu0 %v1154
        %1485 = vmatpush1.bf16.msra.mxu0 %v1153
        %1486 = vmatprep.subr.bf16.mxu0 %v1156
        %1487 = vmatpush1.bf16.msra.mxu0 %v1155
        %1488 = vmatprep.subr.bf16.mxu0 %v1158
        %1489 = vmatpush1.bf16.msra.mxu0 %v1157
        %1490 = vmatprep.subr.bf16.mxu0 %v1160
        %1491 = vmatpush1.bf16.msra.mxu0 %v1159
        %1492 = vmatprep.subr.bf16.mxu0 %v1162
        %1493 = vmatpush1.bf16.msra.mxu0 %v1161
        %1494 = vmatprep.subr.bf16.mxu0 %v1164
        %1495 = vmatpush1.bf16.msra.mxu0 %v1163
        %1496 = vmatprep.subr.bf16.mxu0 %v1166
        %1497 = vmatpush1.bf16.msra.mxu0 %v1165
        %1498 = vmatprep.subr.bf16.mxu0 %v1168
        %1499 = vmatpush1.bf16.msra.mxu0 %v1167
        %1500 = vmatprep.subr.bf16.mxu0 %v1170
        %1501 = vmatpush1.bf16.msra.mxu0 %v1169
        %1502 = vmatprep.subr.bf16.mxu0 %v1172
        %1503 = vmatpush1.bf16.msra.mxu0 %v1171
        %1504 = vmatprep.subr.bf16.mxu0 %v1174
        %1505 = vmatpush1.bf16.msra.mxu0 %v1173
        %1506 = vmatprep.subr.bf16.mxu0 %v1176
        %1507 = vmatpush1.bf16.msra.mxu0 %v1175
        %1508 = vmatprep.subr.bf16.mxu0 %v1178
        %1509 = vmatpush1.bf16.msra.mxu0 %v1177
        %1510 = vmatprep.subr.bf16.mxu0 %v1180
        %1511 = vmatpush1.bf16.msra.mxu0 %v1179
        %1512 = vmatprep.subr.bf16.mxu0 %v1182
        %1513 = vmatpush1.bf16.msra.mxu0 %v1181
        %1514 = vmatprep.subr.bf16.mxu0 %v1184
        %1515 = vmatpush1.bf16.msra.mxu0 %v1183
        %1516 = vmatprep.mubr.bf16.mxu0 %v582
        %1517 = vmatmul.mubr.bf16.gmra.mrb[0].mxu0 %v581
        %v1518 = vpop.f32.mrb[0].mxu0
        %v1519 = vadd.f32 %v1448, %v1518
        %v1520 = vpop.f32.mrb[0].mxu0
        %v1521 = vadd.f32 %v1450, %v1520
        %v1522 = vpop.f32.mrb[0].mxu0
        %v1523 = vadd.f32 %v1452, %v1522
        %v1524 = vpop.f32.mrb[0].mxu0
        %v1525 = vadd.f32 %v1454, %v1524
        %1526 = vmatprep.mubr.bf16.mxu0 %v590
        %1527 = vmatmul.mubr.bf16.gmra.mrb[0].mxu0 %v589
        %v1528 = vpop.f32.mrb[0].mxu0
        %v1529 = vadd.f32 %v1458, %v1528
        %v1530 = vpop.f32.mrb[0].mxu0
        %v1531 = vadd.f32 %v1460, %v1530
        %v1532 = vpop.f32.mrb[0].mxu0
        %v1533 = vadd.f32 %v1462, %v1532
        %v1534 = vpop.f32.mrb[0].mxu0
        %v1535 = vadd.f32 %v1464, %v1534
        %1536 = vmatprep.mubr.bf16.mxu0 %v598
        %1537 = vmatmul.mubr.bf16.gmra.mrb[0].mxu0 %v597
        %v1538 = vpop.f32.mrb[0].mxu0
        %v1539 = vadd.f32 %v1468, %v1538
        %v1540 = vpop.f32.mrb[0].mxu0
        %v1541 = vadd.f32 %v1470, %v1540
        %v1542 = vpop.f32.mrb[0].mxu0
        %v1543 = vadd.f32 %v1472, %v1542
        %v1544 = vpop.f32.mrb[0].mxu0
        %v1545 = vadd.f32 %v1474, %v1544
        %1546 = vmatprep.mubr.bf16.mxu0 %v606
        %1547 = vmatmul.mubr.bf16.gmra.mrb[0].mxu0 %v605
        %v1548 = vpop.f32.mrb[0].mxu0
        %v1549 = vadd.f32 %v1478, %v1548
        %v1550 = vpop.f32.mrb[0].mxu0
        %v1551 = vadd.f32 %v1480, %v1550
        %v1552 = vpop.f32.mrb[0].mxu0
        %v1553 = vpop.f32.mrb[0].mxu0
        %1554 = vdwg.mxu0
        %1555 = vmatprep.subr.bf16.mxu0 %v1186
        %1556 = vmatpush1.bf16.msra.mxu0 %v1185
        %1557 = vmatprep.subr.bf16.mxu0 %v1188
        %1558 = vmatpush1.bf16.msra.mxu0 %v1187
        %1559 = vmatprep.subr.bf16.mxu0 %v1190
        %1560 = vmatpush1.bf16.msra.mxu0 %v1189
        %1561 = vmatprep.subr.bf16.mxu0 %v1192
        %1562 = vmatpush1.bf16.msra.mxu0 %v1191
        %1563 = vmatprep.subr.bf16.mxu0 %v1194
        %1564 = vmatpush1.bf16.msra.mxu0 %v1193
        %1565 = vmatprep.subr.bf16.mxu0 %v1196
        %1566 = vmatpush1.bf16.msra.mxu0 %v1195
        %1567 = vmatprep.subr.bf16.mxu0 %v1198
        %1568 = vmatpush1.bf16.msra.mxu0 %v1197
        %1569 = vmatprep.subr.bf16.mxu0 %v1200
        %1570 = vmatpush1.bf16.msra.mxu0 %v1199
        %1571 = vmatprep.subr.bf16.mxu0 %v1202
        %1572 = vmatpush1.bf16.msra.mxu0 %v1201
        %1573 = vmatprep.subr.bf16.mxu0 %v1204
        %1574 = vmatpush1.bf16.msra.mxu0 %v1203
        %1575 = vmatprep.subr.bf16.mxu0 %v1206
        %1576 = vmatpush1.bf16.msra.mxu0 %v1205
        %1577 = vmatprep.subr.bf16.mxu0 %v1208
        %1578 = vmatpush1.bf16.msra.mxu0 %v1207
        %1579 = vmatprep.subr.bf16.mxu0 0
        %1580 = vmatpush1.bf16.msra.mxu0 0
        %1581 = vmatprep.subr.bf16.mxu0 0
        %1582 = vmatpush1.bf16.msra.mxu0 0
        %1583 = vmatprep.subr.bf16.mxu0 0
        %1584 = vmatpush1.bf16.msra.mxu0 0
        %1585 = vmatprep.subr.bf16.mxu0 0
        %1586 = vmatpush1.bf16.msra.mxu0 0
        %1587 = vmatprep.mubr.bf16.mxu0 %v1331
        %1588 = vmatmul.mubr.bf16.gmra.mrb[0].mxu0 %v583
        %v1589 = vpop.f32.mrb[0].mxu0
        %v1590 = vadd.f32 %v1519, %v1589
        %v1591 = vpop.f32.mrb[0].mxu0
        %v1592 = vadd.f32 %v1521, %v1591
        %v1593 = vpop.f32.mrb[0].mxu0
        %v1594 = vadd.f32 %v1523, %v1593
        %v1595 = vpop.f32.mrb[0].mxu0
        %v1596 = vadd.f32 %v1525, %v1595
        %1597 = vmatprep.mubr.bf16.mxu0 %v1334
        %1598 = vmatmul.mubr.bf16.gmra.mrb[0].mxu0 %v591
        %v1599 = vpop.f32.mrb[0].mxu0
        %v1600 = vadd.f32 %v1529, %v1599
        %v1601 = vpop.f32.mrb[0].mxu0
        %v1602 = vadd.f32 %v1531, %v1601
        %v1603 = vpop.f32.mrb[0].mxu0
        %v1604 = vadd.f32 %v1533, %v1603
        %v1605 = vpop.f32.mrb[0].mxu0
        %v1606 = vadd.f32 %v1535, %v1605
        %1607 = vmatprep.mubr.bf16.mxu0 %v1337
        %1608 = vmatmul.mubr.bf16.gmra.mrb[0].mxu0 %v599
        %v1609 = vpop.f32.mrb[0].mxu0
        %v1610 = vadd.f32 %v1539, %v1609
        %v1611 = vpop.f32.mrb[0].mxu0
        %v1612 = vadd.f32 %v1541, %v1611
        %v1613 = vpop.f32.mrb[0].mxu0
        %v1614 = vadd.f32 %v1543, %v1613
        %v1615 = vpop.f32.mrb[0].mxu0
        %v1616 = vadd.f32 %v1545, %v1615
        %1617 = vmatprep.mubr.bf16.mxu0 %v1340
        %1618 = vmatmul.mubr.bf16.gmra.mrb[0].mxu0 %v607
        %v1619 = vpop.f32.mrb[0].mxu0
        %v1620 = vadd.f32 %v1549, %v1619
        %v1621 = vpop.f32.mrb[0].mxu0
        %v1622 = vadd.f32 %v1551, %v1621
        %v1623 = vpop.f32.mrb[0].mxu0
        %v1624 = vpop.f32.mrb[0].mxu0
        %1625 = vdwg.mxu0
        %v1626 = vadd.f32 %v1590, %v1594
        %v1627 = vadd.f32 %v1626, %v1600
        %v1628 = vadd.f32 %v1627, %v1604
        %v1629 = vadd.f32 %v1628, %v1610
        %v1630 = vadd.f32 %v1629, %v1614
        %v1631 = vadd.f32 %v1630, %v1620
        %v1632 = vrot.slane %v1631, 4
        %v1633 = vadd.f32 %v1631, %v1632
        %v1634 = vrot.slane %v1633, 2
        %v1635 = vadd.f32 %v1633, %v1634
        %v1636 = vrot.slane %v1635, 1
        %v1637 = vadd.f32 %v1635, %v1636
        %v1638 = vadd.f32 %v1592, %v1596
        %v1639 = vadd.f32 %v1638, %v1602
        %v1640 = vadd.f32 %v1639, %v1606
        %v1641 = vadd.f32 %v1640, %v1612
        %v1642 = vadd.f32 %v1641, %v1616
        %v1643 = vadd.f32 %v1642, %v1622
        %v1644 = vrot.slane %v1643, 4
        %v1645 = vadd.f32 %v1643, %v1644
        %v1646 = vrot.slane %v1645, 2
        %v1647 = vadd.f32 %v1645, %v1646
        %v1648 = vrot.slane %v1647, 1
        %v1649 = vadd.f32 %v1647, %v1648
        %v1650 = vmul.f32 %v1590, %v1590
        %v1651 = vmul.f32 %v1592, %v1592
        %v1652 = vmul.f32 %v1594, %v1594
        %v1653 = vmul.f32 %v1596, %v1596
        %v1654 = vmul.f32 %v1600, %v1600
        %v1655 = vmul.f32 %v1602, %v1602
        %v1656 = vmul.f32 %v1604, %v1604
        %v1657 = vmul.f32 %v1606, %v1606
        %v1658 = vmul.f32 %v1610, %v1610
        %v1659 = vmul.f32 %v1612, %v1612
        %v1660 = vmul.f32 %v1614, %v1614
        %v1661 = vmul.f32 %v1616, %v1616
        %v1662 = vmul.f32 %v1620, %v1620
        %v1663 = vmul.f32 %v1622, %v1622
        %v1664 = vadd.f32 %v1650, %v1652
        %v1665 = vadd.f32 %v1664, %v1654
        %v1666 = vadd.f32 %v1665, %v1656
        %v1667 = vadd.f32 %v1666, %v1658
        %v1668 = vadd.f32 %v1667, %v1660
        %v1669 = vadd.f32 %v1668, %v1662
        %v1670 = vrot.slane %v1669, 4
        %v1671 = vadd.f32 %v1669, %v1670
        %v1672 = vrot.slane %v1671, 2
        %v1673 = vadd.f32 %v1671, %v1672
        %v1674 = vrot.slane %v1673, 1
        %v1675 = vadd.f32 %v1673, %v1674
        %v1676 = vadd.f32 %v1651, %v1653
        %v1677 = vadd.f32 %v1676, %v1655
        %v1678 = vadd.f32 %v1677, %v1657
        %v1679 = vadd.f32 %v1678, %v1659
        %v1680 = vadd.f32 %v1679, %v1661
        %v1681 = vadd.f32 %v1680, %v1663
        %v1682 = vrot.slane %v1681, 4
        %v1683 = vadd.f32 %v1681, %v1682
        %v1684 = vrot.slane %v1683, 2
        %v1685 = vadd.f32 %v1683, %v1684
        %v1686 = vrot.slane %v1685, 1
        %v1687 = vadd.f32 %v1685, %v1686
        %v1688 = vmul.f32 %v1637, 0.020408163
        %v1689 = vmul.f32 %v1649, 0.020408163
        %v1690 = vmul.f32 %v1675, 0.020408163
        %v1691 = vmul.f32 %v1687, 0.020408163
        %v1692 = vmul.f32 %v1688, %v1688
        %v1693 = vmul.f32 %v1689, %v1689
        %v1694 = vsub.f32 %v1690, %v1692
        %v1695 = vsub.f32 %v1691, %v1693
        %v1696 = vmax.f32 %v1694, 0.0
        %v1697 = vmax.f32 %v1695, 0.0
        %v1698 = vsub.f32 %v1590, %v1688
        %v1699 = vsub.f32 %v1592, %v1689
        %v1700 = vsub.f32 %v1594, %v1688
        %v1701 = vsub.f32 %v1596, %v1689
        %v1702 = vsub.f32 %v1600, %v1688
        %v1703 = vsub.f32 %v1602, %v1689
        %v1704 = vsub.f32 %v1604, %v1688
        %v1705 = vsub.f32 %v1606, %v1689
        %v1706 = vsub.f32 %v1610, %v1688
        %v1707 = vsub.f32 %v1612, %v1689
        %v1708 = vsub.f32 %v1614, %v1688
        %v1709 = vsub.f32 %v1616, %v1689
        %v1710 = vsub.f32 %v1620, %v1688
        %v1711 = vsub.f32 %v1622, %v1689
        %v1712 = vadd.f32 %v1696, 0.001
        %v1713 = vadd.f32 %v1697, 0.001
        %v1714 = vrsqrt.pop %v1712
        %v1715 = vrsqrt.pop %v1713
        %v1716 = vmul.f32 %v1698, %v1714
        %v1717 = vmul.f32 %v1699, %v1715
        %v1718 = vmul.f32 %v1700, %v1714
        %v1719 = vmul.f32 %v1701, %v1715
        %v1720 = vmul.f32 %v1702, %v1714
        %v1721 = vmul.f32 %v1703, %v1715
        %v1722 = vmul.f32 %v1704, %v1714
        %v1723 = vmul.f32 %v1705, %v1715
        %v1724 = vmul.f32 %v1706, %v1714
        %v1725 = vmul.f32 %v1707, %v1715
        %v1726 = vmul.f32 %v1708, %v1714
        %v1727 = vmul.f32 %v1709, %v1715
        %v1728 = vmul.f32 %v1710, %v1714
        %v1729 = vmul.f32 %v1711, %v1715
        %v1730 = vld [vmem:[%s3] sm:$0x3]
        %v1732 = vlaneseq
        %v1733 = vshrl.u32 %v1732, 7
        %v1734 = vsub.s32 0, %v1733
        %v1735 = vrot.slane %v1730, %v1734
        %v1736 = vlaneseq
        %v1737 = vshrl.u32 %v1736, 7
        %v1738 = vsub.s32 1, %v1737
        %v1739 = vrot.slane %v1730, %v1738
        %v1742 = vmul.f32 %v1716, %v1735
        %v1743 = vmul.f32 %v1717, %v1739
        %v1744 = vmul.f32 %v1718, %v1735
        %v1745 = vmul.f32 %v1719, %v1739
        %v1746 = vmul.f32 %v1720, %v1735
        %v1747 = vmul.f32 %v1721, %v1739
        %v1748 = vmul.f32 %v1722, %v1735
        %v1749 = vmul.f32 %v1723, %v1739
        %v1750 = vmul.f32 %v1724, %v1735
        %v1751 = vmul.f32 %v1725, %v1739
        %v1752 = vmul.f32 %v1726, %v1735
        %v1753 = vmul.f32 %v1727, %v1739
        %v1754 = vmul.f32 %v1728, %v1735
        %v1755 = vmul.f32 %v1729, %v1739
        %v1756 = vld [vmem:[#allocation8] sm:$0x3]
        %v1758 = vlaneseq
        %v1759 = vshrl.u32 %v1758, 7
        %v1760 = vsub.s32 0, %v1759
        %v1761 = vrot.slane %v1756, %v1760
        %v1762 = vlaneseq
        %v1763 = vshrl.u32 %v1762, 7
        %v1764 = vsub.s32 1, %v1763
        %v1765 = vrot.slane %v1756, %v1764
        %v1768 = vadd.f32 %v1742, %v1761
        %v1769 = vadd.f32 %v1743, %v1765
        %v1770 = vadd.f32 %v1744, %v1761
        %v1771 = vadd.f32 %v1745, %v1765
        %v1772 = vadd.f32 %v1746, %v1761
        %v1773 = vadd.f32 %v1747, %v1765
        %v1774 = vadd.f32 %v1748, %v1761
        %v1775 = vadd.f32 %v1749, %v1765
        %v1776 = vadd.f32 %v1750, %v1761
        %v1777 = vadd.f32 %v1751, %v1765
        %v1778 = vadd.f32 %v1752, %v1761
        %v1779 = vadd.f32 %v1753, %v1765
        %v1780 = vadd.f32 %v1754, %v1761
        %v1781 = vadd.f32 %v1755, %v1765
        %v1782 = vlaneseq
        %v1783 = vshrl.u32 %v1782, 7
        %v1784 = vadd.s32 %v1783, 8
        %v1785 = vadd.s32 %v1783, 16
        %v1786 = vadd.s32 %v1783, 24
        %v1787 = vadd.s32 %v1783, 32
        %v1788 = vadd.s32 %v1783, 40
        %v1789 = vadd.s32 %v1783, 48
        %vm1790 = vcmp.lt.s32.totalorder %v1783, 49
        %vm1791 = vcmp.lt.s32.totalorder %v1784, 49
        %vm1792 = vcmp.lt.s32.totalorder %v1785, 49
        %vm1793 = vcmp.lt.s32.totalorder %v1786, 49
        %vm1794 = vcmp.lt.s32.totalorder %v1787, 49
        %vm1795 = vcmp.lt.s32.totalorder %v1788, 49
        %vm1796 = vcmp.lt.s32.totalorder %v1789, 49
        %v1797 = vsel %vm1790, %v1768, 0.0
        %v1798 = vsel %vm1790, %v1769, 0.0
        %v1799 = vsel %vm1791, %v1770, 0.0
        %v1800 = vsel %vm1791, %v1771, 0.0
        %v1801 = vsel %vm1792, %v1772, 0.0
        %v1802 = vsel %vm1792, %v1773, 0.0
        %v1803 = vsel %vm1793, %v1774, 0.0
        %v1804 = vsel %vm1793, %v1775, 0.0
        %v1805 = vsel %vm1794, %v1776, 0.0
        %v1806 = vsel %vm1794, %v1777, 0.0
        %v1807 = vsel %vm1795, %v1778, 0.0
        %v1808 = vsel %vm1795, %v1779, 0.0
        %v1809 = vsel %vm1796, %v1780, 0.0
        %v1810 = vsel %vm1796, %v1781, 0.0
        %v1811 = vpack.c.bf16 %v1799, %v1797
        %v1812 = vpack.c.bf16 %v1800, %v1798
        %v1813 = vpack.c.bf16 %v1803, %v1801
        %v1814 = vpack.c.bf16 %v1804, %v1802
        %v1815 = vpack.c.bf16 %v1807, %v1805
        %v1816 = vpack.c.bf16 %v1808, %v1806
        %v1817 = vpack.c.bf16 %v1809, %v1809
        %v1818 = vpack.c.bf16 %v1810, %v1810
        %v1819 = vld [vmem:[%s363] sm:$0xff]
        %v1820 = vld [vmem:[%s363 + $0x8] sm:$0xff]
        %v1821 = vld [vmem:[%s363 + $0x10] sm:$0xff]
        %v1822 = vld [vmem:[%s363 + $0x18] sm:$0xff]
        %v1823 = vld [vmem:[%s363 + $0x20] sm:$0xff]
        %v1824 = vld [vmem:[%s363 + $0x28] sm:$0xff]
        %v1825 = vld [vmem:[%s363 + $0x30] sm:$0xff]
        %v1826 = vld [vmem:[%s363 + $0x38] sm:$0xff]
        %v1827 = vld [vmem:[%s363 + $0x40] sm:$0xff]
        %v1828 = vld [vmem:[%s363 + $0x48] sm:$0xff]
        %v1829 = vld [vmem:[%s363 + $0x50] sm:$0xff]
        %v1830 = vld [vmem:[%s363 + $0x58] sm:$0xff]
        %v1831 = vld [vmem:[%s363 + $0x60] sm:$0xff]
        %v1832 = vld [vmem:[%s363 + $0x68] sm:$0xff]
        %v1833 = vld [vmem:[%s363 + $0x70] sm:$0xff]
        %v1834 = vld [vmem:[%s363 + $0x78] sm:$0xff]
        %v1835 = vld [vmem:[%s363 + $0x80] sm:$0xff]
        %v1836 = vld [vmem:[%s363 + $0x88] sm:$0xff]
        %v1837 = vld [vmem:[%s363 + $0x90] sm:$0xff]
        %v1838 = vld [vmem:[%s363 + $0x98] sm:$0xff]
        %v1839 = vld [vmem:[%s363 + $0xa0] sm:$0xff]
        %v1840 = vld [vmem:[%s363 + $0xa8] sm:$0xff]
        %v1841 = vld [vmem:[%s363 + $0xb0] sm:$0xff]
        %v1842 = vld [vmem:[%s363 + $0xb8] sm:$0xff]
        %v1843 = vld [vmem:[%s363 + $0xc0] sm:$0xff]
        %v1844 = vld [vmem:[%s363 + $0xc8] sm:$0xff]
        %v1845 = vld [vmem:[%s363 + $0xd0] sm:$0xff]
        %v1846 = vld [vmem:[%s363 + $0xd8] sm:$0xff]
        %v1847 = vld [vmem:[%s363 + $0xe0] sm:$0xff]
        %v1848 = vld [vmem:[%s363 + $0xe8] sm:$0xff]
        %v1849 = vld [vmem:[%s363 + $0xf0] sm:$0xff]
        %v1850 = vld [vmem:[%s363 + $0xf8] sm:$0xff]
        %v1851 = vld [vmem:[%s363 + $0x100] sm:$0xff]
        %v1852 = vld [vmem:[%s363 + $0x108] sm:$0xff]
        %v1853 = vld [vmem:[%s363 + $0x110] sm:$0xff]
        %v1854 = vld [vmem:[%s363 + $0x118] sm:$0xff]
        %v1855 = vld [vmem:[%s363 + $0x120] sm:$0xff]
        %v1856 = vld [vmem:[%s363 + $0x128] sm:$0xff]
        %v1857 = vld [vmem:[%s363 + $0x130] sm:$0xff]
        %v1858 = vld [vmem:[%s363 + $0x138] sm:$0xff]
        %v1859 = vld [vmem:[%s363 + $0x140] sm:$0xff]
        %v1860 = vld [vmem:[%s363 + $0x148] sm:$0xff]
        %v1861 = vld [vmem:[%s363 + $0x150] sm:$0xff]
        %v1862 = vld [vmem:[%s363 + $0x158] sm:$0xff]
        %v1863 = vld [vmem:[%s363 + $0x160] sm:$0xff]
        %v1864 = vld [vmem:[%s363 + $0x168] sm:$0xff]
        %v1865 = vld [vmem:[%s363 + $0x170] sm:$0xff]
        %v1866 = vld [vmem:[%s363 + $0x178] sm:$0xff]
        %v1867 = vld [vmem:[%s363 + $0x180] sm:$0xff]
        %v1868 = vld [vmem:[%s363 + $0x188] sm:$0xff]
        %v1869 = vld [vmem:[%s363 + $0x190] sm:$0xff]
        %v1870 = vld [vmem:[%s363 + $0x198] sm:$0xff]
        %v1871 = vld [vmem:[%s363 + $0x1a0] sm:$0xff]
        %v1872 = vld [vmem:[%s363 + $0x1a8] sm:$0xff]
        %v1873 = vld [vmem:[%s363 + $0x1b0] sm:$0xff]
        %v1874 = vld [vmem:[%s363 + $0x1b8] sm:$0xff]
        %v1875 = vld [vmem:[%s363 + $0x1c0] sm:$0xff]
        %v1876 = vld [vmem:[%s363 + $0x1c8] sm:$0xff]
        %v1877 = vld [vmem:[%s363 + $0x1d0] sm:$0xff]
        %v1878 = vld [vmem:[%s363 + $0x1d8] sm:$0xff]
        %v1879 = vld [vmem:[%s363 + $0x1e0] sm:$0xff]
        %v1880 = vld [vmem:[%s363 + $0x1e8] sm:$0xff]
        %v1881 = vld [vmem:[%s363 + $0x1f0] sm:$0xff]
        %v1882 = vld [vmem:[%s363 + $0x1f8] sm:$0xff]
        %v1947 = vunpack.c.l.b16 %v1819
        %v1948 = vunpack.c.h.b16 %v1819
        %v1949 = vunpack.c.l.b16 %v1820
        %v1950 = vunpack.c.h.b16 %v1820
        %v1951 = vunpack.c.l.b16 %v1821
        %v1952 = vunpack.c.h.b16 %v1821
        %v1953 = vunpack.c.l.b16 %v1822
        %v1954 = vunpack.c.h.b16 %v1822
        %v1955 = vunpack.c.l.b16 %v1823
        %v1956 = vunpack.c.h.b16 %v1823
        %v1957 = vunpack.c.l.b16 %v1824
        %v1958 = vunpack.c.h.b16 %v1824
        %v1959 = vunpack.c.l.b16 %v1825
        %v1960 = vunpack.c.h.b16 %v1825
        %v1961 = vunpack.c.l.b16 %v1826
        %v1962 = vunpack.c.h.b16 %v1826
        %v1963 = vunpack.c.l.b16 %v1827
        %v1964 = vunpack.c.h.b16 %v1827
        %v1965 = vunpack.c.l.b16 %v1828
        %v1966 = vunpack.c.h.b16 %v1828
        %v1967 = vunpack.c.l.b16 %v1829
        %v1968 = vunpack.c.h.b16 %v1829
        %v1969 = vunpack.c.l.b16 %v1830
        %v1970 = vunpack.c.h.b16 %v1830
        %v1971 = vunpack.c.l.b16 %v1831
        %v1972 = vunpack.c.h.b16 %v1831
        %v1973 = vunpack.c.l.b16 %v1832
        %v1974 = vunpack.c.h.b16 %v1832
        %v1975 = vunpack.c.l.b16 %v1833
        %v1976 = vunpack.c.h.b16 %v1833
        %v1977 = vunpack.c.l.b16 %v1834
        %v1978 = vunpack.c.h.b16 %v1834
        %v1979 = vunpack.c.l.b16 %v1835
        %v1980 = vunpack.c.h.b16 %v1835
        %v1981 = vunpack.c.l.b16 %v1836
        %v1982 = vunpack.c.h.b16 %v1836
        %v1983 = vunpack.c.l.b16 %v1837
        %v1984 = vunpack.c.h.b16 %v1837
        %v1985 = vunpack.c.l.b16 %v1838
        %v1986 = vunpack.c.h.b16 %v1838
        %v1987 = vunpack.c.l.b16 %v1839
        %v1988 = vunpack.c.h.b16 %v1839
        %v1989 = vunpack.c.l.b16 %v1840
        %v1990 = vunpack.c.h.b16 %v1840
        %v1991 = vunpack.c.l.b16 %v1841
        %v1992 = vunpack.c.h.b16 %v1841
        %v1993 = vunpack.c.l.b16 %v1842
        %v1994 = vunpack.c.h.b16 %v1842
        %v1995 = vunpack.c.l.b16 %v1843
        %v1996 = vunpack.c.h.b16 %v1843
        %v1997 = vunpack.c.l.b16 %v1844
        %v1998 = vunpack.c.h.b16 %v1844
        %v1999 = vunpack.c.l.b16 %v1845
        %v2000 = vunpack.c.h.b16 %v1845
        %v2001 = vunpack.c.l.b16 %v1846
        %v2002 = vunpack.c.h.b16 %v1846
        %v2003 = vunpack.c.l.b16 %v1847
        %v2004 = vunpack.c.h.b16 %v1847
        %v2005 = vunpack.c.l.b16 %v1848
        %v2006 = vunpack.c.h.b16 %v1848
        %v2007 = vunpack.c.l.b16 %v1849
        %v2008 = vunpack.c.h.b16 %v1849
        %v2009 = vunpack.c.l.b16 %v1850
        %v2010 = vunpack.c.h.b16 %v1850
        %v2011 = vunpack.c.l.b16 %v1851
        %v2012 = vunpack.c.h.b16 %v1851
        %v2013 = vunpack.c.l.b16 %v1852
        %v2014 = vunpack.c.h.b16 %v1852
        %v2015 = vunpack.c.l.b16 %v1853
        %v2016 = vunpack.c.h.b16 %v1853
        %v2017 = vunpack.c.l.b16 %v1854
        %v2018 = vunpack.c.h.b16 %v1854
        %v2019 = vunpack.c.l.b16 %v1855
        %v2020 = vunpack.c.h.b16 %v1855
        %v2021 = vunpack.c.l.b16 %v1856
        %v2022 = vunpack.c.h.b16 %v1856
        %v2023 = vunpack.c.l.b16 %v1857
        %v2024 = vunpack.c.h.b16 %v1857
        %v2025 = vunpack.c.l.b16 %v1858
        %v2026 = vunpack.c.h.b16 %v1858
        %v2027 = vunpack.c.l.b16 %v1859
        %v2028 = vunpack.c.h.b16 %v1859
        %v2029 = vunpack.c.l.b16 %v1860
        %v2030 = vunpack.c.h.b16 %v1860
        %v2031 = vunpack.c.l.b16 %v1861
        %v2032 = vunpack.c.h.b16 %v1861
        %v2033 = vunpack.c.l.b16 %v1862
        %v2034 = vunpack.c.h.b16 %v1862
        %v2035 = vunpack.c.l.b16 %v1863
        %v2036 = vunpack.c.h.b16 %v1863
        %v2037 = vunpack.c.l.b16 %v1864
        %v2038 = vunpack.c.h.b16 %v1864
        %v2039 = vunpack.c.l.b16 %v1865
        %v2040 = vunpack.c.h.b16 %v1865
        %v2041 = vunpack.c.l.b16 %v1866
        %v2042 = vunpack.c.h.b16 %v1866
        %v2043 = vunpack.c.l.b16 %v1867
        %v2044 = vunpack.c.h.b16 %v1867
        %v2045 = vunpack.c.l.b16 %v1868
        %v2046 = vunpack.c.h.b16 %v1868
        %v2047 = vunpack.c.l.b16 %v1869
        %v2048 = vunpack.c.h.b16 %v1869
        %v2049 = vunpack.c.l.b16 %v1870
        %v2050 = vunpack.c.h.b16 %v1870
        %v2051 = vunpack.c.l.b16 %v1871
        %v2052 = vunpack.c.h.b16 %v1871
        %v2053 = vunpack.c.l.b16 %v1872
        %v2054 = vunpack.c.h.b16 %v1872
        %v2055 = vunpack.c.l.b16 %v1873
        %v2056 = vunpack.c.h.b16 %v1873
        %v2057 = vunpack.c.l.b16 %v1874
        %v2058 = vunpack.c.h.b16 %v1874
        %v2059 = vunpack.c.l.b16 %v1875
        %v2060 = vunpack.c.h.b16 %v1875
        %v2061 = vunpack.c.l.b16 %v1876
        %v2062 = vunpack.c.h.b16 %v1876
        %v2063 = vunpack.c.l.b16 %v1877
        %v2064 = vunpack.c.h.b16 %v1877
        %v2065 = vunpack.c.l.b16 %v1878
        %v2066 = vunpack.c.h.b16 %v1878
        %v2067 = vunpack.c.l.b16 %v1879
        %v2068 = vunpack.c.h.b16 %v1879
        %v2069 = vunpack.c.l.b16 %v1880
        %v2070 = vunpack.c.h.b16 %v1880
        %v2071 = vunpack.c.l.b16 %v1881
        %v2072 = vunpack.c.h.b16 %v1881
        %v2073 = vunpack.c.l.b16 %v1882
        %v2074 = vunpack.c.h.b16 %v1882
        %v2075 = vpack.c.b16 %v1951, %v1947
        %v2076 = vpack.c.b16 %v1952, %v1948
        %v2077 = vpack.c.b16 %v1953, %v1949
        %v2078 = vpack.c.b16 %v1954, %v1950
        %v2079 = vpack.c.b16 %v1959, %v1955
        %v2080 = vpack.c.b16 %v1960, %v1956
        %v2081 = vpack.c.b16 %v1961, %v1957
        %v2082 = vpack.c.b16 %v1962, %v1958
        %v2083 = vpack.c.b16 %v1967, %v1963
        %v2084 = vpack.c.b16 %v1968, %v1964
        %v2085 = vpack.c.b16 %v1969, %v1965
        %v2086 = vpack.c.b16 %v1970, %v1966
        %v2087 = vpack.c.b16 %v1975, %v1971
        %v2088 = vpack.c.b16 %v1976, %v1972
        %v2089 = vpack.c.b16 %v1977, %v1973
        %v2090 = vpack.c.b16 %v1978, %v1974
        %v2091 = vpack.c.b16 %v1983, %v1979
        %v2092 = vpack.c.b16 %v1984, %v1980
        %v2093 = vpack.c.b16 %v1985, %v1981
        %v2094 = vpack.c.b16 %v1986, %v1982
        %v2095 = vpack.c.b16 %v1991, %v1987
        %v2096 = vpack.c.b16 %v1992, %v1988
        %v2097 = vpack.c.b16 %v1993, %v1989
        %v2098 = vpack.c.b16 %v1994, %v1990
        %v2099 = vpack.c.b16 %v1999, %v1995
        %v2100 = vpack.c.b16 %v2000, %v1996
        %v2101 = vpack.c.b16 %v2001, %v1997
        %v2102 = vpack.c.b16 %v2002, %v1998
        %v2103 = vpack.c.b16 %v2007, %v2003
        %v2104 = vpack.c.b16 %v2008, %v2004
        %v2105 = vpack.c.b16 %v2009, %v2005
        %v2106 = vpack.c.b16 %v2010, %v2006
        %v2107 = vpack.c.b16 %v2015, %v2011
        %v2108 = vpack.c.b16 %v2016, %v2012
        %v2109 = vpack.c.b16 %v2017, %v2013
        %v2110 = vpack.c.b16 %v2018, %v2014
        %v2111 = vpack.c.b16 %v2023, %v2019
        %v2112 = vpack.c.b16 %v2024, %v2020
        %v2113 = vpack.c.b16 %v2025, %v2021
        %v2114 = vpack.c.b16 %v2026, %v2022
        %v2115 = vpack.c.b16 %v2031, %v2027
        %v2116 = vpack.c.b16 %v2032, %v2028
        %v2117 = vpack.c.b16 %v2033, %v2029
        %v2118 = vpack.c.b16 %v2034, %v2030
        %v2119 = vpack.c.b16 %v2039, %v2035
        %v2120 = vpack.c.b16 %v2040, %v2036
        %v2121 = vpack.c.b16 %v2041, %v2037
        %v2122 = vpack.c.b16 %v2042, %v2038
        %v2123 = vpack.c.b16 %v2047, %v2043
        %v2124 = vpack.c.b16 %v2048, %v2044
        %v2125 = vpack.c.b16 %v2049, %v2045
        %v2126 = vpack.c.b16 %v2050, %v2046
        %v2127 = vpack.c.b16 %v2055, %v2051
        %v2128 = vpack.c.b16 %v2056, %v2052
        %v2129 = vpack.c.b16 %v2057, %v2053
        %v2130 = vpack.c.b16 %v2058, %v2054
        %v2131 = vpack.c.b16 %v2063, %v2059
        %v2132 = vpack.c.b16 %v2064, %v2060
        %v2133 = vpack.c.b16 %v2065, %v2061
        %v2134 = vpack.c.b16 %v2066, %v2062
        %v2135 = vpack.c.b16 %v2071, %v2067
        %v2136 = vpack.c.b16 %v2072, %v2068
        %v2137 = vpack.c.b16 %v2073, %v2069
        %v2138 = vpack.c.b16 %v2074, %v2070
        %2203 = vmatprep.subr.bf16.mxu0 %v2076
        %2204 = vmatpush1.bf16.msra.mxu0 %v2075
        %2205 = vmatprep.subr.bf16.mxu0 %v2080
        %2206 = vmatpush1.bf16.msra.mxu0 %v2079
        %2207 = vmatprep.subr.bf16.mxu0 %v2084
        %2208 = vmatpush1.bf16.msra.mxu0 %v2083
        %2209 = vmatprep.subr.bf16.mxu0 %v2088
        %2210 = vmatpush1.bf16.msra.mxu0 %v2087
        %2211 = vmatprep.subr.bf16.mxu0 %v2092
        %2212 = vmatpush1.bf16.msra.mxu0 %v2091
        %2213 = vmatprep.subr.bf16.mxu0 %v2096
        %2214 = vmatpush1.bf16.msra.mxu0 %v2095
        %2215 = vmatprep.subr.bf16.mxu0 %v2100
        %2216 = vmatpush1.bf16.msra.mxu0 %v2099
        %2217 = vmatprep.subr.bf16.mxu0 %v2104
        %2218 = vmatpush1.bf16.msra.mxu0 %v2103
        %2219 = vmatprep.subr.bf16.mxu0 %v2108
        %2220 = vmatpush1.bf16.msra.mxu0 %v2107
        %2221 = vmatprep.subr.bf16.mxu0 %v2112
        %2222 = vmatpush1.bf16.msra.mxu0 %v2111
        %2223 = vmatprep.subr.bf16.mxu0 %v2116
        %2224 = vmatpush1.bf16.msra.mxu0 %v2115
        %2225 = vmatprep.subr.bf16.mxu0 %v2120
        %2226 = vmatpush1.bf16.msra.mxu0 %v2119
        %2227 = vmatprep.subr.bf16.mxu0 %v2124
        %2228 = vmatpush1.bf16.msra.mxu0 %v2123
        %2229 = vmatprep.subr.bf16.mxu0 %v2128
        %2230 = vmatpush1.bf16.msra.mxu0 %v2127
        %2231 = vmatprep.subr.bf16.mxu0 %v2132
        %2232 = vmatpush1.bf16.msra.mxu0 %v2131
        %2233 = vmatprep.subr.bf16.mxu0 %v2136
        %2234 = vmatpush1.bf16.msra.mxu0 %v2135
        %2235 = vmatprep.mubr.bf16.mxu0 %v1812
        %2236 = vmatmul.mubr.bf16.gmra.mrb[0].mxu0 %v1811
        %v2237 = vpop.f32.mrb[0].mxu0
        %v2238 = vadd.f32 0.0, %v2237
        %v2239 = vpop.f32.mrb[0].mxu0
        %v2240 = vadd.f32 0.0, %v2239
        %v2241 = vpop.f32.mrb[0].mxu0
        %v2242 = vadd.f32 0.0, %v2241
        %v2243 = vpop.f32.mrb[0].mxu0
        %v2244 = vadd.f32 0.0, %v2243
        %2245 = vmatprep.mubr.bf16.mxu0 %v1814
        %2246 = vmatmul.mubr.bf16.gmra.mrb[0].mxu0 %v1813
        %v2247 = vpop.f32.mrb[0].mxu0
        %v2248 = vadd.f32 0.0, %v2247
        %v2249 = vpop.f32.mrb[0].mxu0
        %v2250 = vadd.f32 0.0, %v2249
        %v2251 = vpop.f32.mrb[0].mxu0
        %v2252 = vadd.f32 0.0, %v2251
        %v2253 = vpop.f32.mrb[0].mxu0
        %v2254 = vadd.f32 0.0, %v2253
        %2255 = vmatprep.mubr.bf16.mxu0 %v1816
        %2256 = vmatmul.mubr.bf16.gmra.mrb[0].mxu0 %v1815
        %v2257 = vpop.f32.mrb[0].mxu0
        %v2258 = vadd.f32 0.0, %v2257
        %v2259 = vpop.f32.mrb[0].mxu0
        %v2260 = vadd.f32 0.0, %v2259
        %v2261 = vpop.f32.mrb[0].mxu0
        %v2262 = vadd.f32 0.0, %v2261
        %v2263 = vpop.f32.mrb[0].mxu0
        %v2264 = vadd.f32 0.0, %v2263
        %2265 = vmatprep.mubr.bf16.mxu0 %v1818
        %2266 = vmatmul.mubr.bf16.gmra.mrb[0].mxu0 %v1817
        %v2267 = vpop.f32.mrb[0].mxu0
        %v2268 = vadd.f32 0.0, %v2267
        %v2269 = vpop.f32.mrb[0].mxu0
        %v2270 = vadd.f32 0.0, %v2269
        %v2271 = vpop.f32.mrb[0].mxu0
        %v2272 = vpop.f32.mrb[0].mxu0
        %2273 = vdwg.mxu0
        %2274 = vmatprep.subr.bf16.mxu0 %v2078
        %2275 = vmatpush1.bf16.msra.mxu0 %v2077
        %2276 = vmatprep.subr.bf16.mxu0 %v2082
        %2277 = vmatpush1.bf16.msra.mxu0 %v2081
        %2278 = vmatprep.subr.bf16.mxu0 %v2086
        %2279 = vmatpush1.bf16.msra.mxu0 %v2085
        %2280 = vmatprep.subr.bf16.mxu0 %v2090
        %2281 = vmatpush1.bf16.msra.mxu0 %v2089
        %2282 = vmatprep.subr.bf16.mxu0 %v2094
        %2283 = vmatpush1.bf16.msra.mxu0 %v2093
        %2284 = vmatprep.subr.bf16.mxu0 %v2098
        %2285 = vmatpush1.bf16.msra.mxu0 %v2097
        %2286 = vmatprep.subr.bf16.mxu0 %v2102
        %2287 = vmatpush1.bf16.msra.mxu0 %v2101
        %2288 = vmatprep.subr.bf16.mxu0 %v2106
        %2289 = vmatpush1.bf16.msra.mxu0 %v2105
        %2290 = vmatprep.subr.bf16.mxu0 %v2110
        %2291 = vmatpush1.bf16.msra.mxu0 %v2109
        %2292 = vmatprep.subr.bf16.mxu0 %v2114
        %2293 = vmatpush1.bf16.msra.mxu0 %v2113
        %2294 = vmatprep.subr.bf16.mxu0 %v2118
        %2295 = vmatpush1.bf16.msra.mxu0 %v2117
        %2296 = vmatprep.subr.bf16.mxu0 %v2122
        %2297 = vmatpush1.bf16.msra.mxu0 %v2121
        %2298 = vmatprep.subr.bf16.mxu0 %v2126
        %2299 = vmatpush1.bf16.msra.mxu0 %v2125
        %2300 = vmatprep.subr.bf16.mxu0 %v2130
        %2301 = vmatpush1.bf16.msra.mxu0 %v2129
        %2302 = vmatprep.subr.bf16.mxu0 %v2134
        %2303 = vmatpush1.bf16.msra.mxu0 %v2133
        %2304 = vmatprep.subr.bf16.mxu0 %v2138
        %2305 = vmatpush1.bf16.msra.mxu0 %v2137
        %2306 = vmatprep.mubr.bf16.mxu0 %v1812
        %2307 = vmatmul.mubr.bf16.gmra.mrb[0].mxu0 %v1811
        %v2308 = vpop.f32.mrb[0].mxu0
        %v2309 = vadd.f32 0.0, %v2308
        %v2310 = vpop.f32.mrb[0].mxu0
        %v2311 = vadd.f32 0.0, %v2310
        %v2312 = vpop.f32.mrb[0].mxu0
        %v2313 = vadd.f32 0.0, %v2312
        %v2314 = vpop.f32.mrb[0].mxu0
        %v2315 = vadd.f32 0.0, %v2314
        %2316 = vmatprep.mubr.bf16.mxu0 %v1814
        %2317 = vmatmul.mubr.bf16.gmra.mrb[0].mxu0 %v1813
        %v2318 = vpop.f32.mrb[0].mxu0
        %v2319 = vadd.f32 0.0, %v2318
        %v2320 = vpop.f32.mrb[0].mxu0
        %v2321 = vadd.f32 0.0, %v2320
        %v2322 = vpop.f32.mrb[0].mxu0
        %v2323 = vadd.f32 0.0, %v2322
        %v2324 = vpop.f32.mrb[0].mxu0
        %v2325 = vadd.f32 0.0, %v2324
        %2326 = vmatprep.mubr.bf16.mxu0 %v1816
        %2327 = vmatmul.mubr.bf16.gmra.mrb[0].mxu0 %v1815
        %v2328 = vpop.f32.mrb[0].mxu0
        %v2329 = vadd.f32 0.0, %v2328
        %v2330 = vpop.f32.mrb[0].mxu0
        %v2331 = vadd.f32 0.0, %v2330
        %v2332 = vpop.f32.mrb[0].mxu0
        %v2333 = vadd.f32 0.0, %v2332
        %v2334 = vpop.f32.mrb[0].mxu0
        %v2335 = vadd.f32 0.0, %v2334
        %2336 = vmatprep.mubr.bf16.mxu0 %v1818
        %2337 = vmatmul.mubr.bf16.gmra.mrb[0].mxu0 %v1817
        %v2338 = vpop.f32.mrb[0].mxu0
        %v2339 = vadd.f32 0.0, %v2338
        %v2340 = vpop.f32.mrb[0].mxu0
        %v2341 = vadd.f32 0.0, %v2340
        %v2342 = vpop.f32.mrb[0].mxu0
        %v2343 = vpop.f32.mrb[0].mxu0
        %2344 = vdwg.mxu0
        %v2345 = vadd.f32 %v2238, %v2242
        %v2346 = vadd.f32 %v2345, %v2248
        %v2347 = vadd.f32 %v2346, %v2252
        %v2348 = vadd.f32 %v2347, %v2258
        %v2349 = vadd.f32 %v2348, %v2262
        %v2350 = vadd.f32 %v2349, %v2268
        %v2351 = vrot.slane %v2350, 4
        %v2352 = vadd.f32 %v2350, %v2351
        %v2353 = vrot.slane %v2352, 2
        %v2354 = vadd.f32 %v2352, %v2353
        %v2355 = vrot.slane %v2354, 1
        %v2356 = vadd.f32 %v2354, %v2355
        %v2357 = vadd.f32 %v2240, %v2244
        %v2358 = vadd.f32 %v2357, %v2250
        %v2359 = vadd.f32 %v2358, %v2254
        %v2360 = vadd.f32 %v2359, %v2260
        %v2361 = vadd.f32 %v2360, %v2264
        %v2362 = vadd.f32 %v2361, %v2270
        %v2363 = vrot.slane %v2362, 4
        %v2364 = vadd.f32 %v2362, %v2363
        %v2365 = vrot.slane %v2364, 2
        %v2366 = vadd.f32 %v2364, %v2365
        %v2367 = vrot.slane %v2366, 1
        %v2368 = vadd.f32 %v2366, %v2367
        %v2369 = vadd.f32 %v2309, %v2313
        %v2370 = vadd.f32 %v2369, %v2319
        %v2371 = vadd.f32 %v2370, %v2323
        %v2372 = vadd.f32 %v2371, %v2329
        %v2373 = vadd.f32 %v2372, %v2333
        %v2374 = vadd.f32 %v2373, %v2339
        %v2375 = vrot.slane %v2374, 4
        %v2376 = vadd.f32 %v2374, %v2375
        %v2377 = vrot.slane %v2376, 2
        %v2378 = vadd.f32 %v2376, %v2377
        %v2379 = vrot.slane %v2378, 1
        %v2380 = vadd.f32 %v2378, %v2379
        %v2381 = vadd.f32 %v2311, %v2315
        %v2382 = vadd.f32 %v2381, %v2321
        %v2383 = vadd.f32 %v2382, %v2325
        %v2384 = vadd.f32 %v2383, %v2331
        %v2385 = vadd.f32 %v2384, %v2335
        %v2386 = vadd.f32 %v2385, %v2341
        %v2387 = vrot.slane %v2386, 4
        %v2388 = vadd.f32 %v2386, %v2387
        %v2389 = vrot.slane %v2388, 2
        %v2390 = vadd.f32 %v2388, %v2389
        %v2391 = vrot.slane %v2390, 1
        %v2392 = vadd.f32 %v2390, %v2391
        %v2393 = vmul.f32 %v2238, %v2238
        %v2394 = vmul.f32 %v2240, %v2240
        %v2395 = vmul.f32 %v2309, %v2309
        %v2396 = vmul.f32 %v2311, %v2311
        %v2397 = vmul.f32 %v2242, %v2242
        %v2398 = vmul.f32 %v2244, %v2244
        %v2399 = vmul.f32 %v2313, %v2313
        %v2400 = vmul.f32 %v2315, %v2315
        %v2401 = vmul.f32 %v2248, %v2248
        %v2402 = vmul.f32 %v2250, %v2250
        %v2403 = vmul.f32 %v2319, %v2319
        %v2404 = vmul.f32 %v2321, %v2321
        %v2405 = vmul.f32 %v2252, %v2252
        %v2406 = vmul.f32 %v2254, %v2254
        %v2407 = vmul.f32 %v2323, %v2323
        %v2408 = vmul.f32 %v2325, %v2325
        %v2409 = vmul.f32 %v2258, %v2258
        %v2410 = vmul.f32 %v2260, %v2260
        %v2411 = vmul.f32 %v2329, %v2329
        %v2412 = vmul.f32 %v2331, %v2331
        %v2413 = vmul.f32 %v2262, %v2262
        %v2414 = vmul.f32 %v2264, %v2264
        %v2415 = vmul.f32 %v2333, %v2333
        %v2416 = vmul.f32 %v2335, %v2335
        %v2417 = vmul.f32 %v2268, %v2268
        %v2418 = vmul.f32 %v2270, %v2270
        %v2419 = vmul.f32 %v2339, %v2339
        %v2420 = vmul.f32 %v2341, %v2341
        %v2421 = vadd.f32 %v2393, %v2397
        %v2422 = vadd.f32 %v2421, %v2401
        %v2423 = vadd.f32 %v2422, %v2405
        %v2424 = vadd.f32 %v2423, %v2409
        %v2425 = vadd.f32 %v2424, %v2413
        %v2426 = vadd.f32 %v2425, %v2417
        %v2427 = vrot.slane %v2426, 4
        %v2428 = vadd.f32 %v2426, %v2427
        %v2429 = vrot.slane %v2428, 2
        %v2430 = vadd.f32 %v2428, %v2429
        %v2431 = vrot.slane %v2430, 1
        %v2432 = vadd.f32 %v2430, %v2431
        %v2433 = vadd.f32 %v2394, %v2398
        %v2434 = vadd.f32 %v2433, %v2402
        %v2435 = vadd.f32 %v2434, %v2406
        %v2436 = vadd.f32 %v2435, %v2410
        %v2437 = vadd.f32 %v2436, %v2414
        %v2438 = vadd.f32 %v2437, %v2418
        %v2439 = vrot.slane %v2438, 4
        %v2440 = vadd.f32 %v2438, %v2439
        %v2441 = vrot.slane %v2440, 2
        %v2442 = vadd.f32 %v2440, %v2441
        %v2443 = vrot.slane %v2442, 1
        %v2444 = vadd.f32 %v2442, %v2443
        %v2445 = vadd.f32 %v2395, %v2399
        %v2446 = vadd.f32 %v2445, %v2403
        %v2447 = vadd.f32 %v2446, %v2407
        %v2448 = vadd.f32 %v2447, %v2411
        %v2449 = vadd.f32 %v2448, %v2415
        %v2450 = vadd.f32 %v2449, %v2419
        %v2451 = vrot.slane %v2450, 4
        %v2452 = vadd.f32 %v2450, %v2451
        %v2453 = vrot.slane %v2452, 2
        %v2454 = vadd.f32 %v2452, %v2453
        %v2455 = vrot.slane %v2454, 1
        %v2456 = vadd.f32 %v2454, %v2455
        %v2457 = vadd.f32 %v2396, %v2400
        %v2458 = vadd.f32 %v2457, %v2404
        %v2459 = vadd.f32 %v2458, %v2408
        %v2460 = vadd.f32 %v2459, %v2412
        %v2461 = vadd.f32 %v2460, %v2416
        %v2462 = vadd.f32 %v2461, %v2420
        %v2463 = vrot.slane %v2462, 4
        %v2464 = vadd.f32 %v2462, %v2463
        %v2465 = vrot.slane %v2464, 2
        %v2466 = vadd.f32 %v2464, %v2465
        %v2467 = vrot.slane %v2466, 1
        %v2468 = vadd.f32 %v2466, %v2467
        %v2469 = vmul.f32 %v2356, 0.020408163
        %v2470 = vmul.f32 %v2368, 0.020408163
        %v2471 = vmul.f32 %v2380, 0.020408163
        %v2472 = vmul.f32 %v2392, 0.020408163
        %v2473 = vmul.f32 %v2432, 0.020408163
        %v2474 = vmul.f32 %v2444, 0.020408163
        %v2475 = vmul.f32 %v2456, 0.020408163
        %v2476 = vmul.f32 %v2468, 0.020408163
        %v2477 = vmul.f32 %v2469, %v2469
        %v2478 = vmul.f32 %v2470, %v2470
        %v2479 = vmul.f32 %v2471, %v2471
        %v2480 = vmul.f32 %v2472, %v2472
        %v2481 = vsub.f32 %v2473, %v2477
        %v2482 = vsub.f32 %v2474, %v2478
        %v2483 = vsub.f32 %v2475, %v2479
        %v2484 = vsub.f32 %v2476, %v2480
        %v2485 = vmax.f32 %v2481, 0.0
        %v2486 = vmax.f32 %v2482, 0.0
        %v2487 = vmax.f32 %v2483, 0.0
        %v2488 = vmax.f32 %v2484, 0.0
        %v2489 = vsub.f32 %v2238, %v2469
        %v2490 = vsub.f32 %v2240, %v2470
        %v2491 = vsub.f32 %v2309, %v2471
        %v2492 = vsub.f32 %v2311, %v2472
        %v2493 = vsub.f32 %v2242, %v2469
        %v2494 = vsub.f32 %v2244, %v2470
        %v2495 = vsub.f32 %v2313, %v2471
        %v2496 = vsub.f32 %v2315, %v2472
        %v2497 = vsub.f32 %v2248, %v2469
        %v2498 = vsub.f32 %v2250, %v2470
        %v2499 = vsub.f32 %v2319, %v2471
        %v2500 = vsub.f32 %v2321, %v2472
        %v2501 = vsub.f32 %v2252, %v2469
        %v2502 = vsub.f32 %v2254, %v2470
        %v2503 = vsub.f32 %v2323, %v2471
        %v2504 = vsub.f32 %v2325, %v2472
        %v2505 = vsub.f32 %v2258, %v2469
        %v2506 = vsub.f32 %v2260, %v2470
        %v2507 = vsub.f32 %v2329, %v2471
        %v2508 = vsub.f32 %v2331, %v2472
        %v2509 = vsub.f32 %v2262, %v2469
        %v2510 = vsub.f32 %v2264, %v2470
        %v2511 = vsub.f32 %v2333, %v2471
        %v2512 = vsub.f32 %v2335, %v2472
        %v2513 = vsub.f32 %v2268, %v2469
        %v2514 = vsub.f32 %v2270, %v2470
        %v2515 = vsub.f32 %v2339, %v2471
        %v2516 = vsub.f32 %v2341, %v2472
        %v2517 = vadd.f32 %v2485, 0.001
        %v2518 = vadd.f32 %v2486, 0.001
        %v2519 = vadd.f32 %v2487, 0.001
        %v2520 = vadd.f32 %v2488, 0.001
        %v2521 = vrsqrt.pop %v2517
        %v2522 = vrsqrt.pop %v2518
        %v2523 = vrsqrt.pop %v2519
        %v2524 = vrsqrt.pop %v2520
        %v2525 = vmul.f32 %v2489, %v2521
        %v2526 = vmul.f32 %v2490, %v2522
        %v2527 = vmul.f32 %v2491, %v2523
        %v2528 = vmul.f32 %v2492, %v2524
        %v2529 = vmul.f32 %v2493, %v2521
        %v2530 = vmul.f32 %v2494, %v2522
        %v2531 = vmul.f32 %v2495, %v2523
        %v2532 = vmul.f32 %v2496, %v2524
        %v2533 = vmul.f32 %v2497, %v2521
        %v2534 = vmul.f32 %v2498, %v2522
        %v2535 = vmul.f32 %v2499, %v2523
        %v2536 = vmul.f32 %v2500, %v2524
        %v2537 = vmul.f32 %v2501, %v2521
        %v2538 = vmul.f32 %v2502, %v2522
        %v2539 = vmul.f32 %v2503, %v2523
        %v2540 = vmul.f32 %v2504, %v2524
        %v2541 = vmul.f32 %v2505, %v2521
        %v2542 = vmul.f32 %v2506, %v2522
        %v2543 = vmul.f32 %v2507, %v2523
        %v2544 = vmul.f32 %v2508, %v2524
        %v2545 = vmul.f32 %v2509, %v2521
        %v2546 = vmul.f32 %v2510, %v2522
        %v2547 = vmul.f32 %v2511, %v2523
        %v2548 = vmul.f32 %v2512, %v2524
        %v2549 = vmul.f32 %v2513, %v2521
        %v2550 = vmul.f32 %v2514, %v2522
        %v2551 = vmul.f32 %v2515, %v2523
        %v2552 = vmul.f32 %v2516, %v2524
        %v2553 = vld [vmem:[%s408] sm:$0xf]
        %v2555 = vlaneseq
        %v2556 = vshrl.u32 %v2555, 7
        %v2557 = vsub.s32 0, %v2556
        %v2558 = vrot.slane %v2553, %v2557
        %v2559 = vlaneseq
        %v2560 = vshrl.u32 %v2559, 7
        %v2561 = vsub.s32 1, %v2560
        %v2562 = vrot.slane %v2553, %v2561
        %v2563 = vlaneseq
        %v2564 = vshrl.u32 %v2563, 7
        %v2565 = vsub.s32 2, %v2564
        %v2566 = vrot.slane %v2553, %v2565
        %v2567 = vlaneseq
        %v2568 = vshrl.u32 %v2567, 7
        %v2569 = vsub.s32 3, %v2568
        %v2570 = vrot.slane %v2553, %v2569
        %v2575 = vmul.f32 %v2525, %v2558
        %v2576 = vmul.f32 %v2526, %v2562
        %v2577 = vmul.f32 %v2527, %v2566
        %v2578 = vmul.f32 %v2528, %v2570
        %v2579 = vmul.f32 %v2529, %v2558
        %v2580 = vmul.f32 %v2530, %v2562
        %v2581 = vmul.f32 %v2531, %v2566
        %v2582 = vmul.f32 %v2532, %v2570
        %v2583 = vmul.f32 %v2533, %v2558
        %v2584 = vmul.f32 %v2534, %v2562
        %v2585 = vmul.f32 %v2535, %v2566
        %v2586 = vmul.f32 %v2536, %v2570
        %v2587 = vmul.f32 %v2537, %v2558
        %v2588 = vmul.f32 %v2538, %v2562
        %v2589 = vmul.f32 %v2539, %v2566
        %v2590 = vmul.f32 %v2540, %v2570
        %v2591 = vmul.f32 %v2541, %v2558
        %v2592 = vmul.f32 %v2542, %v2562
        %v2593 = vmul.f32 %v2543, %v2566
        %v2594 = vmul.f32 %v2544, %v2570
        %v2595 = vmul.f32 %v2545, %v2558
        %v2596 = vmul.f32 %v2546, %v2562
        %v2597 = vmul.f32 %v2547, %v2566
        %v2598 = vmul.f32 %v2548, %v2570
        %v2599 = vmul.f32 %v2549, %v2558
        %v2600 = vmul.f32 %v2550, %v2562
        %v2601 = vmul.f32 %v2551, %v2566
        %v2602 = vmul.f32 %v2552, %v2570
        %v2603 = vld [vmem:[%s413] sm:$0xf]
        %v2605 = vlaneseq
        %v2606 = vshrl.u32 %v2605, 7
        %v2607 = vsub.s32 0, %v2606
        %v2608 = vrot.slane %v2603, %v2607
        %v2609 = vlaneseq
        %v2610 = vshrl.u32 %v2609, 7
        %v2611 = vsub.s32 1, %v2610
        %v2612 = vrot.slane %v2603, %v2611
        %v2613 = vlaneseq
        %v2614 = vshrl.u32 %v2613, 7
        %v2615 = vsub.s32 2, %v2614
        %v2616 = vrot.slane %v2603, %v2615
        %v2617 = vlaneseq
        %v2618 = vshrl.u32 %v2617, 7
        %v2619 = vsub.s32 3, %v2618
        %v2620 = vrot.slane %v2603, %v2619
        %v2625 = vadd.f32 %v2575, %v2608
        %v2626 = vadd.f32 %v2576, %v2612
        %v2627 = vadd.f32 %v2577, %v2616
        %v2628 = vadd.f32 %v2578, %v2620
        %v2629 = vadd.f32 %v2579, %v2608
        %v2630 = vadd.f32 %v2580, %v2612
        %v2631 = vadd.f32 %v2581, %v2616
        %v2632 = vadd.f32 %v2582, %v2620
        %v2633 = vadd.f32 %v2583, %v2608
        %v2634 = vadd.f32 %v2584, %v2612
        %v2635 = vadd.f32 %v2585, %v2616
        %v2636 = vadd.f32 %v2586, %v2620
        %v2637 = vadd.f32 %v2587, %v2608
        %v2638 = vadd.f32 %v2588, %v2612
        %v2639 = vadd.f32 %v2589, %v2616
        %v2640 = vadd.f32 %v2590, %v2620
        %v2641 = vadd.f32 %v2591, %v2608
        %v2642 = vadd.f32 %v2592, %v2612
        %v2643 = vadd.f32 %v2593, %v2616
        %v2644 = vadd.f32 %v2594, %v2620
        %v2645 = vadd.f32 %v2595, %v2608
        %v2646 = vadd.f32 %v2596, %v2612
        %v2647 = vadd.f32 %v2597, %v2616
        %v2648 = vadd.f32 %v2598, %v2620
        %v2649 = vadd.f32 %v2599, %v2608
        %v2650 = vadd.f32 %v2600, %v2612
        %v2651 = vadd.f32 %v2601, %v2616
        %v2652 = vadd.f32 %v2602, %v2620
        %2653 = vst [vmem:[%s403] sm:$0xff] %v2625
        %2654 = vst [vmem:[%s403 + $0x8] sm:$0xff] %v2626
        %2655 = vst [vmem:[%s403 + $0x10] sm:$0xff] %v2627
        %2656 = vst [vmem:[%s403 + $0x18] sm:$0xff] %v2628
        %2657 = vst [vmem:[%s403 + $0x20] sm:$0xff] %v2629
        %2658 = vst [vmem:[%s403 + $0x28] sm:$0xff] %v2630
        %2659 = vst [vmem:[%s403 + $0x30] sm:$0xff] %v2631
        %2660 = vst [vmem:[%s403 + $0x38] sm:$0xff] %v2632
        %2661 = vst [vmem:[%s403 + $0x40] sm:$0xff] %v2633
        %2662 = vst [vmem:[%s403 + $0x48] sm:$0xff] %v2634
        %2663 = vst [vmem:[%s403 + $0x50] sm:$0xff] %v2635
        %2664 = vst [vmem:[%s403 + $0x58] sm:$0xff] %v2636
        %2665 = vst [vmem:[%s403 + $0x60] sm:$0xff] %v2637
        %2666 = vst [vmem:[%s403 + $0x68] sm:$0xff] %v2638
        %2667 = vst [vmem:[%s403 + $0x70] sm:$0xff] %v2639
        %2668 = vst [vmem:[%s403 + $0x78] sm:$0xff] %v2640
        %2669 = vst [vmem:[%s403 + $0x80] sm:$0xff] %v2641
        %2670 = vst [vmem:[%s403 + $0x88] sm:$0xff] %v2642
        %2671 = vst [vmem:[%s403 + $0x90] sm:$0xff] %v2643
        %2672 = vst [vmem:[%s403 + $0x98] sm:$0xff] %v2644
        %2673 = vst [vmem:[%s403 + $0xa0] sm:$0xff] %v2645
        %2674 = vst [vmem:[%s403 + $0xa8] sm:$0xff] %v2646
        %2675 = vst [vmem:[%s403 + $0xb0] sm:$0xff] %v2647
        %2676 = vst [vmem:[%s403 + $0xb8] sm:$0xff] %v2648
        %2677 = vst [vmem:[%s403 + $0xc0] sm:$0xff] %v2649
        %2678 = vst [vmem:[%s403 + $0xc8] sm:$0xff] %v2650
        %2679 = vst [vmem:[%s403 + $0xd0] sm:$0xff] %v2651
        %2680 = vst [vmem:[%s403 + $0xd8] sm:$0xff] %v2652
        %s2681 = sand.u32 %s216, 1
        %s2682 = scalar_lea.sflag [#allocation4], %s2681
        %s2683 = sand.u32 %s216, 1
        %s2684 = smul.addr %s2683, 224
        %s2685 = scalar_lea.vmem [#allocation11], %s2684
        // Predicated region
        $region73: #{tpu_custom_call.1} parent=51 // pred_check
          %p2686 = pneg %p226
        $region74: #{tpu_custom_call.1} parent=51 // pred_check_branch
          %2688 = sbr.rel (%p2686) target = $region76
        $region75: #{tpu_custom_call.1} parent=51 // pred_region
          %s2689 = smul.u32 4, %s25
          %s2691 = ssub.s32 3584, 3584
          %2692 = vsyncadd %s2682, %s2691
          %s2693 = smul.addr %s2689, 128
          %s2694 = scalar_lea.hbm %s8, %s2693
          %s2695 = sshll.u32 %s2685, 4
          %s2696 = int_to_ptr.vmem [resolvable:$true] %s2695
          %2701 = dma.vmem_to_hbm [thread:$0]  %s2696, 3584, %s2694, %s2682, 512, 1536, 32
        $region76: #{tpu_custom_call.1} parent=51 // pred_fallthru
          _
      $region52: #{tpu_custom_call.1} parent=5 // pred_fallthru
        _
      %p2702 = scmp.le.s32.totalorder 2, %s20
      // Predicated region
      $region77: #{tpu_custom_call.1} parent=5 // pred_check
        %p2703 = pneg %p2702
      $region78: #{tpu_custom_call.1} parent=5 // pred_check_branch
        %2705 = sbr.rel (%p2703) target = $region80
      $region79: #{tpu_custom_call.1} parent=5 // pred_region
        %s2706 = ssub.s32 %s20, 2
        // Predicated region
        $region81: #{tpu_custom_call.1} parent=79 // pred_check
          %p2707 = pneg %p232
        $region82: #{tpu_custom_call.1} parent=79 // pred_check_branch
          %2709 = sbr.rel (%p2707) target = $region84
        $region83: #{tpu_custom_call.1} parent=79 // pred_region
          %s2710 = sand.u32 %s217, 1
          %s2711 = scalar_lea.sflag [#allocation4], %s2710
          %s2712 = sand.u32 %s217, 1
          %s2713 = smul.addr %s2712, 224
          %s2714 = scalar_lea.vmem [#allocation11], %s2713
          %2715 = dma.done %s2711, 3584
        $region84: #{tpu_custom_call.1} parent=79 // pred_fallthru
          _
      $region80: #{tpu_custom_call.1} parent=5 // pred_fallthru
        _
    $region6: #{tpu_custom_call.1} parent=1 // loop_footer
      %s24 = sadd.s32 1, %s20
    $region7: #{tpu_custom_call.1} parent=1 // loop_footer_branch
      %19 = sbr.rel target = $region3
    $region8: #{tpu_custom_call.1} parent=1 // loop_exit
      _
    %2716 = vsyncpa [#allocation3], 1
    %s2717 = scalar_lea.sflag [#allocation3], 1
    %2718 = vsyncpa %s2717, 1
    %2719 = vsyncpa [#allocation6], 1
    %2720 = vsyncpa [#allocation9], 1
    %2721 = vsyncpa [#allocation4], 1
    %s2722 = scalar_lea.sflag [#allocation4], 1
    %2723 = vsyncpa %s2722, 1

</llo_original>
